<compile_context>
chip_gen: v7x
topology: tpu7x:2x2x1
jax: 0.10.0
libtpu: 0.0.40
codegen_flags: <defaults>
</compile_context>

<pallas_src>
import functools

import jax
import jax.numpy as jnp
from jax import lax
from jax.experimental import pallas as pl
from jax.experimental.pallas import tpu as pltpu

# Model dimensions (from the PyTorch module).
HIDDEN = 12
INPUT = 26
NUM_LAYERS = 2
L1, L2, OUT = 96, 56, 1

# Padded / packed kernel dimensions.
IP = 128        # input-feature lane padding
HP = 128        # hidden-state lane padding (lanes >= HIDDEN stay exactly 0)
GATE_N = 128    # packed gate block width (one 128-lane MXU tile)
HEAD_N = 128    # padded MLP head width
OUT_PAD = 128   # lane-dense output slab; column 0 holds the real output

# 16-lane slots inside the packed gate block.
S_NI = 0        # n gate, input  part: W_in*x + b_in
S_Z1 = 16       # z preactivation (copy 1)
S_R1 = 48       # r preactivation (copy 1)
S_NH = 64       # n gate, hidden part: W_hn*h + b_hn
S_R2 = 80       # r preactivation (copy 2)
S_Z2 = 112      # z preactivation (copy 2)


# ----------------------------------------------------------------------------
# Kernel
# ----------------------------------------------------------------------------
def recn_kernel(x_ref, h_ref,
                w0x_ref, b0x_ref, w0h_ref, b0h_ref,
                wf1_ref, bf1_ref,
                w1_ref, b1_ref, w2_ref, b2_ref, wo_ref, bo_ref,
                y_ref, hout_ref,
                gi_ref,
                *, seq_len, bb):
    f32 = jnp.float32
    bf16 = jnp.bfloat16

    # Hoisted layer-0 input projection for every timestep: one MXU pass off the
    # serial recurrence.  Staged in VMEM scratch so only the per-step bb-row
    # slice is live inside the unrolled loop.
    x = x_ref[...].reshape(seq_len * bb, IP).astype(bf16)
    gi_ref[...] = (jnp.dot(x, w0x_ref[...], preferred_element_type=f32)
                   + b0x_ref[...])

    h0 = h_ref[0]                                   # (bb, HP) f32
    h1 = h_ref[1]

    lane = lax.broadcasted_iota(jnp.int32, (bb, HP), 1)
    mask = lane < HIDDEN                            # keep padded h lanes exactly 0

    def gru_update(g, h_prev):
        # g layout: see module docstring.  Only lanes [0:12) of the result are
        # meaningful; every other lane is masked back to zero so the padded-lane
        # invariant of the carried state is preserved.
        rz = jax.nn.sigmoid(g)
        rzr = pltpu.roll(rz, 16, axis=1)            # z -> lanes [0:12), r -> [64:76)
        prod = rzr * g                              # lanes [64:76): r * (W_hn*h + b_hn)
        n = jnp.tanh(g + pltpu.roll(prod, 64, axis=1))   # lanes [0:12): n
        h_new = (1.0 - rzr) * n + rzr * h_prev
        return jnp.where(mask, h_new, 0.0)

    # Fully unrolled time loop (seq_len is small & static): per step each GRU
    # layer is a single (bb,128)x(128,128) bf16 MXU tile on the serial chain.
    for t in range(seq_len):
        gi_t = gi_ref[pl.ds(t * bb, bb), :]

        gh0 = (jnp.dot(h0.astype(bf16), w0h_ref[...], preferred_element_type=f32)
               + b0h_ref[...])
        h0 = gru_update(gi_t + gh0, h0)

        # Layer 1: [h0 | h1] packed into one 128-lane vreg -> one fused matmul.
        xh = (h0 + pltpu.roll(h1, 64, axis=1)).astype(bf16)
        g1 = (jnp.dot(xh, wf1_ref[...], preferred_element_type=f32)
              + bf1_ref[...])
        h1 = gru_update(g1, h1)

    # MLP head (dropout = identity): linear -> relu -> linear -> relu -> out.
    a1 = jnp.maximum(
        jnp.dot(h1.astype(bf16), w1_ref[...], preferred_element_type=f32)
        + b1_ref[...], 0.0)
    a2 = jnp.maximum(
        jnp.dot(a1.astype(bf16), w2_ref[...], preferred_element_type=f32)
        + b2_ref[...], 0.0)
    y = (jnp.dot(a2.astype(bf16), wo_ref[...], preferred_element_type=f32)
         + bo_ref[...])

    y_ref[...] = y
    hout_ref[0, :, :] = h0
    hout_ref[1, :, :] = h1


# ----------------------------------------------------------------------------
# One-time weight packing (NOT part of the per-call forward path).
# Padded weight/bias entries are exactly zero so padded lanes never leak.
# ----------------------------------------------------------------------------
def _pack_gru_w(w, row0, n_col):
    """(3H, in) PyTorch GRU weight -> (128, 128) packed (in, gate-block)."""
    wt = jnp.asarray(w, jnp.float32).T                  # (in, 3H), gates [r|z|n]
    in_dim = wt.shape[0]
    r = wt[:, :HIDDEN]
    z = wt[:, HIDDEN:2 * HIDDEN]
    n = wt[:, 2 * HIDDEN:]
    out = jnp.zeros((128, GATE_N), jnp.float32)
    for col, blk in ((S_R1, r), (S_R2, r), (S_Z1, z), (S_Z2, z), (n_col, n)):
        out = out.at[row0:row0 + in_dim, col:col + HIDDEN].set(blk)
    return out


def _pack_gru_b(b, n_col):
    b = jnp.asarray(b, jnp.float32).reshape(-1)         # (3H,), gates [r|z|n]
    r = b[:HIDDEN]
    z = b[HIDDEN:2 * HIDDEN]
    n = b[2 * HIDDEN:]
    out = jnp.zeros((1, GATE_N), jnp.float32)
    for col, blk in ((S_R1, r), (S_R2, r), (S_Z1, z), (S_Z2, z), (n_col, n)):
        out = out.at[0, col:col + HIDDEN].set(blk)
    return out


def pack_params(params):
    """Repack PyTorch-layout parameters for the kernel.  Call ONCE and reuse
    the returned tuple across recn_forward calls."""
    bf16 = jnp.bfloat16
    f32 = jnp.float32

    w0x = _pack_gru_w(params["wih0"], 0, S_NI).astype(bf16)
    b0x = _pack_gru_b(params["bih0"], S_NI)
    w0h = _pack_gru_w(params["whh0"], 0, S_NH).astype(bf16)
    b0h = _pack_gru_b(params["bhh0"], S_NH)

    # Layer-1 fused weight over xh = [h0 at lanes 0:12 | h1 at lanes 64:76].
    wf1 = (_pack_gru_w(params["wih1"], 0, S_NI)
           + _pack_gru_w(params["whh1"], 64, S_NH)).astype(bf16)
    bf1 = _pack_gru_b(params["bih1"], S_NI) + _pack_gru_b(params["bhh1"], S_NH)

    w1p = (jnp.zeros((HP, HEAD_N), f32)
           .at[:HIDDEN, :L1].set(jnp.asarray(params["w1"], f32).T).astype(bf16))
    b1p = jnp.zeros((1, HEAD_N), f32).at[0, :L1].set(
        jnp.asarray(params["b1"], f32).reshape(-1))
    w2p = (jnp.zeros((HEAD_N, HEAD_N), f32)
           .at[:L1, :L2].set(jnp.asarray(params["w2"], f32).T).astype(bf16))
    b2p = jnp.zeros((1, HEAD_N), f32).at[0, :L2].set(
        jnp.asarray(params["b2"], f32).reshape(-1))
    wop = (jnp.zeros((HEAD_N, OUT_PAD), f32)
           .at[:L2, :OUT].set(jnp.asarray(params["wo"], f32).T).astype(bf16))
    bop = jnp.zeros((1, OUT_PAD), f32).at[0, :OUT].set(
        jnp.asarray(params["bo"], f32).reshape(-1))

    return (w0x, b0x, w0h, b0h, wf1, bf1, w1p, b1p, w2p, b2p, wop, bop)


# ----------------------------------------------------------------------------
# Wrapper
# ----------------------------------------------------------------------------
def _round_up(v, m):
    return ((v + m - 1) // m) * m


def _choose_bb(batch):
    """Batch-block size: big enough to amortize MXU fill/drain and per-grid-step
    overhead, but keeping >=2 grid blocks when the batch allows (two v7x
    TensorCores; the batch grid axis is marked "parallel")."""
    b8 = _round_up(max(batch, 1), 8)
    if b8 <= 8:
        return 8
    return int(min(128, _round_up((b8 + 1) // 2, 8)))


@jax.jit
def recn_forward(x, h, packed):
    B, S, F = x.shape
    bb = _choose_bb(B)
    b_pad = _round_up(B, bb)
    n_blocks = b_pad // bb
    f32 = jnp.float32

    # Time-major, batch padded to the block size, features lane-padded.  The
    # per-batch-block view is expressed purely via BlockSpec (no regroup copy).
    x_p = jnp.zeros((S, b_pad, IP), f32).at[:, :B, :F].set(
        jnp.transpose(x.astype(f32), (1, 0, 2)))
    h_p = jnp.zeros((NUM_LAYERS, b_pad, HP), f32).at[:, :B, :HIDDEN].set(
        h.astype(f32))

    kernel = functools.partial(recn_kernel, seq_len=S, bb=bb)

    def const_spec(shape):
        nd = len(shape)
        return pl.BlockSpec(shape, lambda b, _nd=nd: (0,) * _nd)

    in_specs = [
        pl.BlockSpec((S, bb, IP), lambda b: (0, b, 0)),
        pl.BlockSpec((NUM_LAYERS, bb, HP), lambda b: (0, b, 0)),
    ] + [const_spec(p.shape) for p in packed]

    y_full, h_full = pl.pallas_call(
        kernel,
        out_shape=(
            jax.ShapeDtypeStruct((b_pad, OUT_PAD), f32),
            jax.ShapeDtypeStruct((NUM_LAYERS, b_pad, HP), f32),
        ),
        grid=(n_blocks,),
        in_specs=in_specs,
        out_specs=(
            pl.BlockSpec((bb, OUT_PAD), lambda b: (b, 0)),
            pl.BlockSpec((NUM_LAYERS, bb, HP), lambda b: (0, b, 0)),
        ),
        scratch_shapes=[pltpu.VMEM((S * bb, GATE_N), jnp.float32)],
        compiler_params=pltpu.CompilerParams(
            dimension_semantics=("parallel",)),
    )(x_p, h_p, *packed)

    return y_full[:B, :OUT], h_full[:, :B, :HIDDEN]


# ----------------------------------------------------------------------------
# Pure-JAX reference (PyTorch GRU semantics) for correctness checking.
# operand_dtype=bfloat16 mirrors the kernel's MXU operand precision
# (f32 accumulation, f32 state); operand_dtype=float32 is the full-precision
# PyTorch-equivalent forward.
# ----------------------------------------------------------------------------
def recn_reference(x, h, params, operand_dtype=jnp.float32):
    hi = lax.Precision.HIGHEST

    def mm(a, b):
        return jnp.dot(a.astype(operand_dtype), b.astype(operand_dtype),
                       precision=hi, preferred_element_type=jnp.float32)

    def cell(x_t, h_prev, wih, whh, bih, bhh):
        gi = mm(x_t, wih.T) + bih
        gh = mm(h_prev, whh.T) + bhh
        i_r, i_z, i_n = jnp.split(gi, 3, axis=1)
        h_r, h_z, h_n = jnp.split(gh, 3, axis=1)
        r = jax.nn.sigmoid(i_r + h_r)
        z = jax.nn.sigmoid(i_z + h_z)
        n = jnp.tanh(i_n + r * h_n)
        return (1.0 - z) * n + z * h_prev

    h0, h1 = h[0], h[1]
    for t in range(x.shape[1]):
        x_t = x[:, t, :]
        h0 = cell(x_t, h0, params["wih0"], params["whh0"],
                  params["bih0"], params["bhh0"])
        h1 = cell(h0, h1, params["wih1"], params["whh1"],
                  params["bih1"], params["bhh1"])
    a1 = jnp.maximum(mm(h1, params["w1"].T) + params["b1"], 0.0)
    a2 = jnp.maximum(mm(a1, params["w2"].T) + params["b2"], 0.0)
    y = mm(a2, params["wo"].T) + params["bo"]
    return y, jnp.stack([h0, h1])


def init_params(key):
    """Deterministic init mirroring PyTorch's uniform(-1/sqrt(fan_in), ...)."""
    ks = jax.random.split(key, 16)
    k_rnn = 1.0 / jnp.sqrt(HIDDEN)

    def u(k, shape, bound):
        return jax.random.uniform(k, shape, jnp.float32, -bound, bound)

    return {
        "wih0": u(ks[0], (3 * HIDDEN, INPUT), k_rnn),
        "whh0": u(ks[1], (3 * HIDDEN, HIDDEN), k_rnn),
        "bih0": u(ks[2], (1, 3 * HIDDEN), k_rnn),
        "bhh0": u(ks[3], (1, 3 * HIDDEN), k_rnn),
        "wih1": u(ks[4], (3 * HIDDEN, HIDDEN), k_rnn),
        "whh1": u(ks[5], (3 * HIDDEN, HIDDEN), k_rnn),
        "bih1": u(ks[6], (1, 3 * HIDDEN), k_rnn),
        "bhh1": u(ks[7], (1, 3 * HIDDEN), k_rnn),
        "w1": u(ks[8], (L1, HIDDEN), 1.0 / jnp.sqrt(HIDDEN)),
        "b1": u(ks[9], (1, L1), 1.0 / jnp.sqrt(HIDDEN)),
        "w2": u(ks[10], (L2, L1), 1.0 / jnp.sqrt(L1)),
        "b2": u(ks[11], (1, L2), 1.0 / jnp.sqrt(L1)),
        "wo": u(ks[12], (OUT, L2), 1.0 / jnp.sqrt(L2)),
        "bo": u(ks[13], (1, OUT), 1.0 / jnp.sqrt(L2)),
    }


if __name__ == "__main__":
    key = jax.random.PRNGKey(0)
    k_p, k_x = jax.random.split(key)

    params = init_params(k_p)
    packed = pack_params(params)     # one-time packing, outside the forward path

    batch, seq = 2, 8
    x = jax.random.normal(k_x, (batch, seq, INPUT), dtype=jnp.float32)
    h0 = jnp.zeros((NUM_LAYERS, batch, HIDDEN), dtype=jnp.float32)   # init_hidden

    y, h_out = recn_forward(x, h0, packed)
    jax.block_until_ready((y, h_out))

    assert y.shape == (batch, OUT)
    assert h_out.shape == (NUM_LAYERS, batch, HIDDEN)

    # Tight check against a reference that matches the kernel's bf16 MXU operand
    # precision (validates gate packing / rolls / recurrence exactly).
    y_bf, h_bf = recn_reference(x, h0, params, operand_dtype=jnp.bfloat16)
    assert jnp.allclose(y, y_bf, rtol=1e-3, atol=1e-3)
    assert jnp.allclose(h_out, h_bf, rtol=1e-3, atol=1e-3)

    # Looser sanity check against the full-f32 PyTorch-equivalent forward
    # (remaining difference is only the bf16 matmul-operand rounding).
    y_ref, h_ref = recn_reference(x, h0, params, operand_dtype=jnp.float32)
    assert jnp.allclose(y, y_ref, rtol=5e-2, atol=5e-2)
    assert jnp.allclose(h_out, h_ref, rtol=5e-2, atol=5e-2)

    print("KERNEL_OK")
</pallas_src>

<mosaic_0001>
module attributes {stable_mosaic.version = 11 : i64} {
  func.func @recn_kernel(%arg0: i32, %arg1: memref<8x8x128xf32, #tpu.memory_space<vmem>>, %arg2: memref<2x8x128xf32, #tpu.memory_space<vmem>>, %arg3: memref<128x128xbf16, #tpu.memory_space<vmem>>, %arg4: memref<1x128xf32, #tpu.memory_space<vmem>>, %arg5: memref<128x128xbf16, #tpu.memory_space<vmem>>, %arg6: memref<1x128xf32, #tpu.memory_space<vmem>>, %arg7: memref<128x128xbf16, #tpu.memory_space<vmem>>, %arg8: memref<1x128xf32, #tpu.memory_space<vmem>>, %arg9: memref<128x128xbf16, #tpu.memory_space<vmem>>, %arg10: memref<1x128xf32, #tpu.memory_space<vmem>>, %arg11: memref<128x128xbf16, #tpu.memory_space<vmem>>, %arg12: memref<1x128xf32, #tpu.memory_space<vmem>>, %arg13: memref<128x128xbf16, #tpu.memory_space<vmem>>, %arg14: memref<1x128xf32, #tpu.memory_space<vmem>>, %arg15: memref<8x128xf32, #tpu.memory_space<vmem>>, %arg16: memref<2x8x128xf32, #tpu.memory_space<vmem>>, %arg17: memref<64x128xf32, #tpu.memory_space<vmem>>) attributes {dimension_semantics = [#tpu.dimension_semantics<parallel>], iteration_bounds = array<i64: 1>, scalar_prefetch = 0 : i64, scratch_operands = 1 : i64, tpu.core_type = #tpu.core_type<tc>, window_params = [{transform_indices = @transform_0, window_bounds = array<i64: 8, 8, 128>}, {transform_indices = @transform_1, window_bounds = array<i64: 2, 8, 128>}, {pipeline_mode = #tpu.pipeline_mode<synchronous>, transform_indices = @transform_2, window_bounds = array<i64: 128, 128>}, {pipeline_mode = #tpu.pipeline_mode<synchronous>, transform_indices = @transform_3, window_bounds = array<i64: 1, 128>}, {pipeline_mode = #tpu.pipeline_mode<synchronous>, transform_indices = @transform_4, window_bounds = array<i64: 128, 128>}, {pipeline_mode = #tpu.pipeline_mode<synchronous>, transform_indices = @transform_5, window_bounds = array<i64: 1, 128>}, {pipeline_mode = #tpu.pipeline_mode<synchronous>, transform_indices = @transform_6, window_bounds = array<i64: 128, 128>}, {pipeline_mode = #tpu.pipeline_mode<synchronous>, transform_indices = @transform_7, window_bounds = array<i64: 1, 128>}, {pipeline_mode = #tpu.pipeline_mode<synchronous>, transform_indices = @transform_8, window_bounds = array<i64: 128, 128>}, {pipeline_mode = #tpu.pipeline_mode<synchronous>, transform_indices = @transform_9, window_bounds = array<i64: 1, 128>}, {pipeline_mode = #tpu.pipeline_mode<synchronous>, transform_indices = @transform_10, window_bounds = array<i64: 128, 128>}, {pipeline_mode = #tpu.pipeline_mode<synchronous>, transform_indices = @transform_11, window_bounds = array<i64: 1, 128>}, {pipeline_mode = #tpu.pipeline_mode<synchronous>, transform_indices = @transform_12, window_bounds = array<i64: 128, 128>}, {pipeline_mode = #tpu.pipeline_mode<synchronous>, transform_indices = @transform_13, window_bounds = array<i64: 1, 128>}, {transform_indices = @transform_14, window_bounds = array<i64: 8, 128>}, {transform_indices = @transform_15, window_bounds = array<i64: 2, 8, 128>}]} {
    %c0 = arith.constant 0 : index
    %c0_0 = arith.constant 0 : index
    %c0_1 = arith.constant 0 : index
    %0 = vector.load %arg1[%c0, %c0_0, %c0_1] : memref<8x8x128xf32, #tpu.memory_space<vmem>>, vector<8x8x128xf32>
    %1 = vector.shape_cast %0 : vector<8x8x128xf32> to vector<64x128xf32>
    %2 = arith.truncf %1 : vector<64x128xf32> to vector<64x128xbf16>
    %c0_2 = arith.constant 0 : index
    %c0_3 = arith.constant 0 : index
    %3 = vector.load %arg3[%c0_2, %c0_3] : memref<128x128xbf16, #tpu.memory_space<vmem>>, vector<128x128xbf16>
    %cst = arith.constant dense<0.000000e+00> : vector<64x128xf32>
    %4 = tpu.matmul %2, %3, %cst {dimension_numbers = #tpu.dot_dimension_numbers<[1], [0], [0], [1], [0, 0, 1, 1], [], []>} : vector<64x128xbf16>, vector<128x128xbf16>, vector<64x128xf32> -> vector<64x128xf32>
    %c0_4 = arith.constant 0 : index
    %c0_5 = arith.constant 0 : index
    %5 = vector.load %arg4[%c0_4, %c0_5] : memref<1x128xf32, #tpu.memory_space<vmem>>, vector<1x128xf32>
    %6 = vector.broadcast %5 : vector<1x128xf32> to vector<64x128xf32>
    %7 = arith.addf %4, %6 : vector<64x128xf32>
    %c0_6 = arith.constant 0 : index
    %c0_7 = arith.constant 0 : index
    %8 = vector.load %arg17[%c0_6, %c0_7] : memref<64x128xf32, #tpu.memory_space<vmem>>, vector<64x128xf32>
    tpu.vector_store %arg17[%c0_6, %c0_7], %7 {strides = array<i32>} : memref<64x128xf32, #tpu.memory_space<vmem>>, vector<64x128xf32>,
    %c0_8 = arith.constant 0 : index
    %c0_9 = arith.constant 0 : index
    %c0_10 = arith.constant 0 : index
    %9 = vector.load %arg2[%c0_8, %c0_9, %c0_10] : memref<2x8x128xf32, #tpu.memory_space<vmem>>, vector<1x8x128xf32>
    %10 = vector.shape_cast %9 : vector<1x8x128xf32> to vector<8x128xf32>
    %c1 = arith.constant 1 : index
    %c0_11 = arith.constant 0 : index
    %c0_12 = arith.constant 0 : index
    %11 = vector.load %arg2[%c1, %c0_11, %c0_12] : memref<2x8x128xf32, #tpu.memory_space<vmem>>, vector<1x8x128xf32>
    %12 = vector.shape_cast %11 : vector<1x8x128xf32> to vector<8x128xf32>
    %13 = tpu.iota {dimensions = array<i32: 1>} : vector<8x128xi32>
    %c12_i32 = arith.constant 12 : i32
    %14 = vector.broadcast %c12_i32 : i32 to vector<8x128xi32>
    %15 = arith.cmpi slt, %13, %14 : vector<8x128xi32>
    %c0_13 = arith.constant 0 : index
    %c0_14 = arith.constant 0 : index
    %16 = vector.load %arg17[%c0_13, %c0_14] : memref<64x128xf32, #tpu.memory_space<vmem>>, vector<8x128xf32>
    %17 = arith.truncf %10 : vector<8x128xf32> to vector<8x128xbf16>
    %c0_15 = arith.constant 0 : index
    %c0_16 = arith.constant 0 : index
    %18 = vector.load %arg5[%c0_15, %c0_16] : memref<128x128xbf16, #tpu.memory_space<vmem>>, vector<128x128xbf16>
    %cst_17 = arith.constant dense<0.000000e+00> : vector<8x128xf32>
    %19 = tpu.matmul %17, %18, %cst_17 {dimension_numbers = #tpu.dot_dimension_numbers<[1], [0], [0], [1], [0, 0, 1, 1], [], []>} : vector<8x128xbf16>, vector<128x128xbf16>, vector<8x128xf32> -> vector<8x128xf32>
    %c0_18 = arith.constant 0 : index
    %c0_19 = arith.constant 0 : index
    %20 = vector.load %arg6[%c0_18, %c0_19] : memref<1x128xf32, #tpu.memory_space<vmem>>, vector<1x128xf32>
    %21 = vector.broadcast %20 : vector<1x128xf32> to vector<8x128xf32>
    %22 = arith.addf %19, %21 : vector<8x128xf32>
    %23 = arith.addf %16, %22 : vector<8x128xf32>
    %24 = arith.negf %23 : vector<8x128xf32>
    %25 = math.exp %24 : vector<8x128xf32>
    %cst_20 = arith.constant 1.000000e+00 : f32
    %26 = vector.broadcast %cst_20 : f32 to vector<8x128xf32>
    %27 = arith.addf %26, %25 : vector<8x128xf32>
    %28 = arith.divf %26, %27 : vector<8x128xf32>
    %c16_i32 = arith.constant 16 : i32
    %29 = tpu.dynamic_rotate %28 by %c16_i32 dim 1 : vector<8x128xf32>, i32 -> vector<8x128xf32>
    %30 = arith.mulf %29, %23 : vector<8x128xf32>
    %c64_i32 = arith.constant 64 : i32
    %31 = tpu.dynamic_rotate %30 by %c64_i32 dim 1 : vector<8x128xf32>, i32 -> vector<8x128xf32>
    %32 = arith.addf %23, %31 : vector<8x128xf32>
    %33 = math.tanh %32 : vector<8x128xf32>
    %cst_21 = arith.constant 1.000000e+00 : f32
    %34 = vector.broadcast %cst_21 : f32 to vector<8x128xf32>
    %35 = arith.subf %34, %29 : vector<8x128xf32>
    %36 = arith.mulf %35, %33 : vector<8x128xf32>
    %37 = arith.mulf %29, %10 : vector<8x128xf32>
    %38 = arith.addf %36, %37 : vector<8x128xf32>
    %cst_22 = arith.constant 0.000000e+00 : f32
    %39 = vector.broadcast %cst_22 : f32 to vector<8x128xf32>
    %40 = arith.select %15, %38, %39 : vector<8x128xi1>, vector<8x128xf32>
    %c64_i32_23 = arith.constant 64 : i32
    %41 = tpu.dynamic_rotate %12 by %c64_i32_23 dim 1 : vector<8x128xf32>, i32 -> vector<8x128xf32>
    %42 = arith.addf %40, %41 : vector<8x128xf32>
    %43 = arith.truncf %42 : vector<8x128xf32> to vector<8x128xbf16>
    %c0_24 = arith.constant 0 : index
    %c0_25 = arith.constant 0 : index
    %44 = vector.load %arg7[%c0_24, %c0_25] : memref<128x128xbf16, #tpu.memory_space<vmem>>, vector<128x128xbf16>
    %cst_26 = arith.constant dense<0.000000e+00> : vector<8x128xf32>
    %45 = tpu.matmul %43, %44, %cst_26 {dimension_numbers = #tpu.dot_dimension_numbers<[1], [0], [0], [1], [0, 0, 1, 1], [], []>} : vector<8x128xbf16>, vector<128x128xbf16>, vector<8x128xf32> -> vector<8x128xf32>
    %c0_27 = arith.constant 0 : index
    %c0_28 = arith.constant 0 : index
    %46 = vector.load %arg8[%c0_27, %c0_28] : memref<1x128xf32, #tpu.memory_space<vmem>>, vector<1x128xf32>
    %47 = vector.broadcast %46 : vector<1x128xf32> to vector<8x128xf32>
    %48 = arith.addf %45, %47 : vector<8x128xf32>
    %49 = arith.negf %48 : vector<8x128xf32>
    %50 = math.exp %49 : vector<8x128xf32>
    %cst_29 = arith.constant 1.000000e+00 : f32
    %51 = vector.broadcast %cst_29 : f32 to vector<8x128xf32>
    %52 = arith.addf %51, %50 : vector<8x128xf32>
    %53 = arith.divf %51, %52 : vector<8x128xf32>
    %c16_i32_30 = arith.constant 16 : i32
    %54 = tpu.dynamic_rotate %53 by %c16_i32_30 dim 1 : vector<8x128xf32>, i32 -> vector<8x128xf32>
    %55 = arith.mulf %54, %48 : vector<8x128xf32>
    %c64_i32_31 = arith.constant 64 : i32
    %56 = tpu.dynamic_rotate %55 by %c64_i32_31 dim 1 : vector<8x128xf32>, i32 -> vector<8x128xf32>
    %57 = arith.addf %48, %56 : vector<8x128xf32>
    %58 = math.tanh %57 : vector<8x128xf32>
    %cst_32 = arith.constant 1.000000e+00 : f32
    %59 = vector.broadcast %cst_32 : f32 to vector<8x128xf32>
    %60 = arith.subf %59, %54 : vector<8x128xf32>
    %61 = arith.mulf %60, %58 : vector<8x128xf32>
    %62 = arith.mulf %54, %12 : vector<8x128xf32>
    %63 = arith.addf %61, %62 : vector<8x128xf32>
    %cst_33 = arith.constant 0.000000e+00 : f32
    %64 = vector.broadcast %cst_33 : f32 to vector<8x128xf32>
    %65 = arith.select %15, %63, %64 : vector<8x128xi1>, vector<8x128xf32>
    %c8 = arith.constant 8 : index
    %c0_34 = arith.constant 0 : index
    %66 = vector.load %arg17[%c8, %c0_34] : memref<64x128xf32, #tpu.memory_space<vmem>>, vector<8x128xf32>
    %67 = arith.truncf %40 : vector<8x128xf32> to vector<8x128xbf16>
    %c0_35 = arith.constant 0 : index
    %c0_36 = arith.constant 0 : index
    %68 = vector.load %arg5[%c0_35, %c0_36] : memref<128x128xbf16, #tpu.memory_space<vmem>>, vector<128x128xbf16>
    %cst_37 = arith.constant dense<0.000000e+00> : vector<8x128xf32>
    %69 = tpu.matmul %67, %68, %cst_37 {dimension_numbers = #tpu.dot_dimension_numbers<[1], [0], [0], [1], [0, 0, 1, 1], [], []>} : vector<8x128xbf16>, vector<128x128xbf16>, vector<8x128xf32> -> vector<8x128xf32>
    %c0_38 = arith.constant 0 : index
    %c0_39 = arith.constant 0 : index
    %70 = vector.load %arg6[%c0_38, %c0_39] : memref<1x128xf32, #tpu.memory_space<vmem>>, vector<1x128xf32>
    %71 = vector.broadcast %70 : vector<1x128xf32> to vector<8x128xf32>
    %72 = arith.addf %69, %71 : vector<8x128xf32>
    %73 = arith.addf %66, %72 : vector<8x128xf32>
    %74 = arith.negf %73 : vector<8x128xf32>
    %75 = math.exp %74 : vector<8x128xf32>
    %cst_40 = arith.constant 1.000000e+00 : f32
    %76 = vector.broadcast %cst_40 : f32 to vector<8x128xf32>
    %77 = arith.addf %76, %75 : vector<8x128xf32>
    %78 = arith.divf %76, %77 : vector<8x128xf32>
    %c16_i32_41 = arith.constant 16 : i32
    %79 = tpu.dynamic_rotate %78 by %c16_i32_41 dim 1 : vector<8x128xf32>, i32 -> vector<8x128xf32>
    %80 = arith.mulf %79, %73 : vector<8x128xf32>
    %c64_i32_42 = arith.constant 64 : i32
    %81 = tpu.dynamic_rotate %80 by %c64_i32_42 dim 1 : vector<8x128xf32>, i32 -> vector<8x128xf32>
    %82 = arith.addf %73, %81 : vector<8x128xf32>
    %83 = math.tanh %82 : vector<8x128xf32>
    %cst_43 = arith.constant 1.000000e+00 : f32
    %84 = vector.broadcast %cst_43 : f32 to vector<8x128xf32>
    %85 = arith.subf %84, %79 : vector<8x128xf32>
    %86 = arith.mulf %85, %83 : vector<8x128xf32>
    %87 = arith.mulf %79, %40 : vector<8x128xf32>
    %88 = arith.addf %86, %87 : vector<8x128xf32>
    %cst_44 = arith.constant 0.000000e+00 : f32
    %89 = vector.broadcast %cst_44 : f32 to vector<8x128xf32>
    %90 = arith.select %15, %88, %89 : vector<8x128xi1>, vector<8x128xf32>
    %c64_i32_45 = arith.constant 64 : i32
    %91 = tpu.dynamic_rotate %65 by %c64_i32_45 dim 1 : vector<8x128xf32>, i32 -> vector<8x128xf32>
    %92 = arith.addf %90, %91 : vector<8x128xf32>
    %93 = arith.truncf %92 : vector<8x128xf32> to vector<8x128xbf16>
    %c0_46 = arith.constant 0 : index
    %c0_47 = arith.constant 0 : index
    %94 = vector.load %arg7[%c0_46, %c0_47] : memref<128x128xbf16, #tpu.memory_space<vmem>>, vector<128x128xbf16>
    %cst_48 = arith.constant dense<0.000000e+00> : vector<8x128xf32>
    %95 = tpu.matmul %93, %94, %cst_48 {dimension_numbers = #tpu.dot_dimension_numbers<[1], [0], [0], [1], [0, 0, 1, 1], [], []>} : vector<8x128xbf16>, vector<128x128xbf16>, vector<8x128xf32> -> vector<8x128xf32>
    %c0_49 = arith.constant 0 : index
    %c0_50 = arith.constant 0 : index
    %96 = vector.load %arg8[%c0_49, %c0_50] : memref<1x128xf32, #tpu.memory_space<vmem>>, vector<1x128xf32>
    %97 = vector.broadcast %96 : vector<1x128xf32> to vector<8x128xf32>
    %98 = arith.addf %95, %97 : vector<8x128xf32>
    %99 = arith.negf %98 : vector<8x128xf32>
    %100 = math.exp %99 : vector<8x128xf32>
    %cst_51 = arith.constant 1.000000e+00 : f32
    %101 = vector.broadcast %cst_51 : f32 to vector<8x128xf32>
    %102 = arith.addf %101, %100 : vector<8x128xf32>
    %103 = arith.divf %101, %102 : vector<8x128xf32>
    %c16_i32_52 = arith.constant 16 : i32
    %104 = tpu.dynamic_rotate %103 by %c16_i32_52 dim 1 : vector<8x128xf32>, i32 -> vector<8x128xf32>
    %105 = arith.mulf %104, %98 : vector<8x128xf32>
    %c64_i32_53 = arith.constant 64 : i32
    %106 = tpu.dynamic_rotate %105 by %c64_i32_53 dim 1 : vector<8x128xf32>, i32 -> vector<8x128xf32>
    %107 = arith.addf %98, %106 : vector<8x128xf32>
    %108 = math.tanh %107 : vector<8x128xf32>
    %cst_54 = arith.constant 1.000000e+00 : f32
    %109 = vector.broadcast %cst_54 : f32 to vector<8x128xf32>
    %110 = arith.subf %109, %104 : vector<8x128xf32>
    %111 = arith.mulf %110, %108 : vector<8x128xf32>
    %112 = arith.mulf %104, %65 : vector<8x128xf32>
    %113 = arith.addf %111, %112 : vector<8x128xf32>
    %cst_55 = arith.constant 0.000000e+00 : f32
    %114 = vector.broadcast %cst_55 : f32 to vector<8x128xf32>
    %115 = arith.select %15, %113, %114 : vector<8x128xi1>, vector<8x128xf32>
    %c16 = arith.constant 16 : index
    %c0_56 = arith.constant 0 : index
    %116 = vector.load %arg17[%c16, %c0_56] : memref<64x128xf32, #tpu.memory_space<vmem>>, vector<8x128xf32>
    %117 = arith.truncf %90 : vector<8x128xf32> to vector<8x128xbf16>
    %c0_57 = arith.constant 0 : index
    %c0_58 = arith.constant 0 : index
    %118 = vector.load %arg5[%c0_57, %c0_58] : memref<128x128xbf16, #tpu.memory_space<vmem>>, vector<128x128xbf16>
    %cst_59 = arith.constant dense<0.000000e+00> : vector<8x128xf32>
    %119 = tpu.matmul %117, %118, %cst_59 {dimension_numbers = #tpu.dot_dimension_numbers<[1], [0], [0], [1], [0, 0, 1, 1], [], []>} : vector<8x128xbf16>, vector<128x128xbf16>, vector<8x128xf32> -> vector<8x128xf32>
    %c0_60 = arith.constant 0 : index
    %c0_61 = arith.constant 0 : index
    %120 = vector.load %arg6[%c0_60, %c0_61] : memref<1x128xf32, #tpu.memory_space<vmem>>, vector<1x128xf32>
    %121 = vector.broadcast %120 : vector<1x128xf32> to vector<8x128xf32>
    %122 = arith.addf %119, %121 : vector<8x128xf32>
    %123 = arith.addf %116, %122 : vector<8x128xf32>
    %124 = arith.negf %123 : vector<8x128xf32>
    %125 = math.exp %124 : vector<8x128xf32>
    %cst_62 = arith.constant 1.000000e+00 : f32
    %126 = vector.broadcast %cst_62 : f32 to vector<8x128xf32>
    %127 = arith.addf %126, %125 : vector<8x128xf32>
    %128 = arith.divf %126, %127 : vector<8x128xf32>
    %c16_i32_63 = arith.constant 16 : i32
    %129 = tpu.dynamic_rotate %128 by %c16_i32_63 dim 1 : vector<8x128xf32>, i32 -> vector<8x128xf32>
    %130 = arith.mulf %129, %123 : vector<8x128xf32>
    %c64_i32_64 = arith.constant 64 : i32
    %131 = tpu.dynamic_rotate %130 by %c64_i32_64 dim 1 : vector<8x128xf32>, i32 -> vector<8x128xf32>
    %132 = arith.addf %123, %131 : vector<8x128xf32>
    %133 = math.tanh %132 : vector<8x128xf32>
    %cst_65 = arith.constant 1.000000e+00 : f32
    %134 = vector.broadcast %cst_65 : f32 to vector<8x128xf32>
    %135 = arith.subf %134, %129 : vector<8x128xf32>
    %136 = arith.mulf %135, %133 : vector<8x128xf32>
    %137 = arith.mulf %129, %90 : vector<8x128xf32>
    %138 = arith.addf %136, %137 : vector<8x128xf32>
    %cst_66 = arith.constant 0.000000e+00 : f32
    %139 = vector.broadcast %cst_66 : f32 to vector<8x128xf32>
    %140 = arith.select %15, %138, %139 : vector<8x128xi1>, vector<8x128xf32>
    %c64_i32_67 = arith.constant 64 : i32
    %141 = tpu.dynamic_rotate %115 by %c64_i32_67 dim 1 : vector<8x128xf32>, i32 -> vector<8x128xf32>
    %142 = arith.addf %140, %141 : vector<8x128xf32>
    %143 = arith.truncf %142 : vector<8x128xf32> to vector<8x128xbf16>
    %c0_68 = arith.constant 0 : index
    %c0_69 = arith.constant 0 : index
    %144 = vector.load %arg7[%c0_68, %c0_69] : memref<128x128xbf16, #tpu.memory_space<vmem>>, vector<128x128xbf16>
    %cst_70 = arith.constant dense<0.000000e+00> : vector<8x128xf32>
    %145 = tpu.matmul %143, %144, %cst_70 {dimension_numbers = #tpu.dot_dimension_numbers<[1], [0], [0], [1], [0, 0, 1, 1], [], []>} : vector<8x128xbf16>, vector<128x128xbf16>, vector<8x128xf32> -> vector<8x128xf32>
    %c0_71 = arith.constant 0 : index
    %c0_72 = arith.constant 0 : index
    %146 = vector.load %arg8[%c0_71, %c0_72] : memref<1x128xf32, #tpu.memory_space<vmem>>, vector<1x128xf32>
    %147 = vector.broadcast %146 : vector<1x128xf32> to vector<8x128xf32>
    %148 = arith.addf %145, %147 : vector<8x128xf32>
    %149 = arith.negf %148 : vector<8x128xf32>
    %150 = math.exp %149 : vector<8x128xf32>
    %cst_73 = arith.constant 1.000000e+00 : f32
    %151 = vector.broadcast %cst_73 : f32 to vector<8x128xf32>
    %152 = arith.addf %151, %150 : vector<8x128xf32>
    %153 = arith.divf %151, %152 : vector<8x128xf32>
    %c16_i32_74 = arith.constant 16 : i32
    %154 = tpu.dynamic_rotate %153 by %c16_i32_74 dim 1 : vector<8x128xf32>, i32 -> vector<8x128xf32>
    %155 = arith.mulf %154, %148 : vector<8x128xf32>
    %c64_i32_75 = arith.constant 64 : i32
    %156 = tpu.dynamic_rotate %155 by %c64_i32_75 dim 1 : vector<8x128xf32>, i32 -> vector<8x128xf32>
    %157 = arith.addf %148, %156 : vector<8x128xf32>
    %158 = math.tanh %157 : vector<8x128xf32>
    %cst_76 = arith.constant 1.000000e+00 : f32
    %159 = vector.broadcast %cst_76 : f32 to vector<8x128xf32>
    %160 = arith.subf %159, %154 : vector<8x128xf32>
    %161 = arith.mulf %160, %158 : vector<8x128xf32>
    %162 = arith.mulf %154, %115 : vector<8x128xf32>
    %163 = arith.addf %161, %162 : vector<8x128xf32>
    %cst_77 = arith.constant 0.000000e+00 : f32
    %164 = vector.broadcast %cst_77 : f32 to vector<8x128xf32>
    %165 = arith.select %15, %163, %164 : vector<8x128xi1>, vector<8x128xf32>
    %c24 = arith.constant 24 : index
    %c0_78 = arith.constant 0 : index
    %166 = vector.load %arg17[%c24, %c0_78] : memref<64x128xf32, #tpu.memory_space<vmem>>, vector<8x128xf32>
    %167 = arith.truncf %140 : vector<8x128xf32> to vector<8x128xbf16>
    %c0_79 = arith.constant 0 : index
    %c0_80 = arith.constant 0 : index
    %168 = vector.load %arg5[%c0_79, %c0_80] : memref<128x128xbf16, #tpu.memory_space<vmem>>, vector<128x128xbf16>
    %cst_81 = arith.constant dense<0.000000e+00> : vector<8x128xf32>
    %169 = tpu.matmul %167, %168, %cst_81 {dimension_numbers = #tpu.dot_dimension_numbers<[1], [0], [0], [1], [0, 0, 1, 1], [], []>} : vector<8x128xbf16>, vector<128x128xbf16>, vector<8x128xf32> -> vector<8x128xf32>
    %c0_82 = arith.constant 0 : index
    %c0_83 = arith.constant 0 : index
    %170 = vector.load %arg6[%c0_82, %c0_83] : memref<1x128xf32, #tpu.memory_space<vmem>>, vector<1x128xf32>
    %171 = vector.broadcast %170 : vector<1x128xf32> to vector<8x128xf32>
    %172 = arith.addf %169, %171 : vector<8x128xf32>
    %173 = arith.addf %166, %172 : vector<8x128xf32>
    %174 = arith.negf %173 : vector<8x128xf32>
    %175 = math.exp %174 : vector<8x128xf32>
    %cst_84 = arith.constant 1.000000e+00 : f32
    %176 = vector.broadcast %cst_84 : f32 to vector<8x128xf32>
    %177 = arith.addf %176, %175 : vector<8x128xf32>
    %178 = arith.divf %176, %177 : vector<8x128xf32>
    %c16_i32_85 = arith.constant 16 : i32
    %179 = tpu.dynamic_rotate %178 by %c16_i32_85 dim 1 : vector<8x128xf32>, i32 -> vector<8x128xf32>
    %180 = arith.mulf %179, %173 : vector<8x128xf32>
    %c64_i32_86 = arith.constant 64 : i32
    %181 = tpu.dynamic_rotate %180 by %c64_i32_86 dim 1 : vector<8x128xf32>, i32 -> vector<8x128xf32>
    %182 = arith.addf %173, %181 : vector<8x128xf32>
    %183 = math.tanh %182 : vector<8x128xf32>
    %cst_87 = arith.constant 1.000000e+00 : f32
    %184 = vector.broadcast %cst_87 : f32 to vector<8x128xf32>
    %185 = arith.subf %184, %179 : vector<8x128xf32>
    %186 = arith.mulf %185, %183 : vector<8x128xf32>
    %187 = arith.mulf %179, %140 : vector<8x128xf32>
    %188 = arith.addf %186, %187 : vector<8x128xf32>
    %cst_88 = arith.constant 0.000000e+00 : f32
    %189 = vector.broadcast %cst_88 : f32 to vector<8x128xf32>
    %190 = arith.select %15, %188, %189 : vector<8x128xi1>, vector<8x128xf32>
    %c64_i32_89 = arith.constant 64 : i32
    %191 = tpu.dynamic_rotate %165 by %c64_i32_89 dim 1 : vector<8x128xf32>, i32 -> vector<8x128xf32>
    %192 = arith.addf %190, %191 : vector<8x128xf32>
    %193 = arith.truncf %192 : vector<8x128xf32> to vector<8x128xbf16>
    %c0_90 = arith.constant 0 : index
    %c0_91 = arith.constant 0 : index
    %194 = vector.load %arg7[%c0_90, %c0_91] : memref<128x128xbf16, #tpu.memory_space<vmem>>, vector<128x128xbf16>
    %cst_92 = arith.constant dense<0.000000e+00> : vector<8x128xf32>
    %195 = tpu.matmul %193, %194, %cst_92 {dimension_numbers = #tpu.dot_dimension_numbers<[1], [0], [0], [1], [0, 0, 1, 1], [], []>} : vector<8x128xbf16>, vector<128x128xbf16>, vector<8x128xf32> -> vector<8x128xf32>
    %c0_93 = arith.constant 0 : index
    %c0_94 = arith.constant 0 : index
    %196 = vector.load %arg8[%c0_93, %c0_94] : memref<1x128xf32, #tpu.memory_space<vmem>>, vector<1x128xf32>
    %197 = vector.broadcast %196 : vector<1x128xf32> to vector<8x128xf32>
    %198 = arith.addf %195, %197 : vector<8x128xf32>
    %199 = arith.negf %198 : vector<8x128xf32>
    %200 = math.exp %199 : vector<8x128xf32>
    %cst_95 = arith.constant 1.000000e+00 : f32
    %201 = vector.broadcast %cst_95 : f32 to vector<8x128xf32>
    %202 = arith.addf %201, %200 : vector<8x128xf32>
    %203 = arith.divf %201, %202 : vector<8x128xf32>
    %c16_i32_96 = arith.constant 16 : i32
    %204 = tpu.dynamic_rotate %203 by %c16_i32_96 dim 1 : vector<8x128xf32>, i32 -> vector<8x128xf32>
    %205 = arith.mulf %204, %198 : vector<8x128xf32>
    %c64_i32_97 = arith.constant 64 : i32
    %206 = tpu.dynamic_rotate %205 by %c64_i32_97 dim 1 : vector<8x128xf32>, i32 -> vector<8x128xf32>
    %207 = arith.addf %198, %206 : vector<8x128xf32>
    %208 = math.tanh %207 : vector<8x128xf32>
    %cst_98 = arith.constant 1.000000e+00 : f32
    %209 = vector.broadcast %cst_98 : f32 to vector<8x128xf32>
    %210 = arith.subf %209, %204 : vector<8x128xf32>
    %211 = arith.mulf %210, %208 : vector<8x128xf32>
    %212 = arith.mulf %204, %165 : vector<8x128xf32>
    %213 = arith.addf %211, %212 : vector<8x128xf32>
    %cst_99 = arith.constant 0.000000e+00 : f32
    %214 = vector.broadcast %cst_99 : f32 to vector<8x128xf32>
    %215 = arith.select %15, %213, %214 : vector<8x128xi1>, vector<8x128xf32>
    %c32 = arith.constant 32 : index
    %c0_100 = arith.constant 0 : index
    %216 = vector.load %arg17[%c32, %c0_100] : memref<64x128xf32, #tpu.memory_space<vmem>>, vector<8x128xf32>
    %217 = arith.truncf %190 : vector<8x128xf32> to vector<8x128xbf16>
    %c0_101 = arith.constant 0 : index
    %c0_102 = arith.constant 0 : index
    %218 = vector.load %arg5[%c0_101, %c0_102] : memref<128x128xbf16, #tpu.memory_space<vmem>>, vector<128x128xbf16>
    %cst_103 = arith.constant dense<0.000000e+00> : vector<8x128xf32>
    %219 = tpu.matmul %217, %218, %cst_103 {dimension_numbers = #tpu.dot_dimension_numbers<[1], [0], [0], [1], [0, 0, 1, 1], [], []>} : vector<8x128xbf16>, vector<128x128xbf16>, vector<8x128xf32> -> vector<8x128xf32>
    %c0_104 = arith.constant 0 : index
    %c0_105 = arith.constant 0 : index
    %220 = vector.load %arg6[%c0_104, %c0_105] : memref<1x128xf32, #tpu.memory_space<vmem>>, vector<1x128xf32>
    %221 = vector.broadcast %220 : vector<1x128xf32> to vector<8x128xf32>
    %222 = arith.addf %219, %221 : vector<8x128xf32>
    %223 = arith.addf %216, %222 : vector<8x128xf32>
    %224 = arith.negf %223 : vector<8x128xf32>
    %225 = math.exp %224 : vector<8x128xf32>
    %cst_106 = arith.constant 1.000000e+00 : f32
    %226 = vector.broadcast %cst_106 : f32 to vector<8x128xf32>
    %227 = arith.addf %226, %225 : vector<8x128xf32>
    %228 = arith.divf %226, %227 : vector<8x128xf32>
    %c16_i32_107 = arith.constant 16 : i32
    %229 = tpu.dynamic_rotate %228 by %c16_i32_107 dim 1 : vector<8x128xf32>, i32 -> vector<8x128xf32>
    %230 = arith.mulf %229, %223 : vector<8x128xf32>
    %c64_i32_108 = arith.constant 64 : i32
    %231 = tpu.dynamic_rotate %230 by %c64_i32_108 dim 1 : vector<8x128xf32>, i32 -> vector<8x128xf32>
    %232 = arith.addf %223, %231 : vector<8x128xf32>
    %233 = math.tanh %232 : vector<8x128xf32>
    %cst_109 = arith.constant 1.000000e+00 : f32
    %234 = vector.broadcast %cst_109 : f32 to vector<8x128xf32>
    %235 = arith.subf %234, %229 : vector<8x128xf32>
    %236 = arith.mulf %235, %233 : vector<8x128xf32>
    %237 = arith.mulf %229, %190 : vector<8x128xf32>
    %238 = arith.addf %236, %237 : vector<8x128xf32>
    %cst_110 = arith.constant 0.000000e+00 : f32
    %239 = vector.broadcast %cst_110 : f32 to vector<8x128xf32>
    %240 = arith.select %15, %238, %239 : vector<8x128xi1>, vector<8x128xf32>
    %c64_i32_111 = arith.constant 64 : i32
    %241 = tpu.dynamic_rotate %215 by %c64_i32_111 dim 1 : vector<8x128xf32>, i32 -> vector<8x128xf32>
    %242 = arith.addf %240, %241 : vector<8x128xf32>
    %243 = arith.truncf %242 : vector<8x128xf32> to vector<8x128xbf16>
    %c0_112 = arith.constant 0 : index
    %c0_113 = arith.constant 0 : index
    %244 = vector.load %arg7[%c0_112, %c0_113] : memref<128x128xbf16, #tpu.memory_space<vmem>>, vector<128x128xbf16>
    %cst_114 = arith.constant dense<0.000000e+00> : vector<8x128xf32>
    %245 = tpu.matmul %243, %244, %cst_114 {dimension_numbers = #tpu.dot_dimension_numbers<[1], [0], [0], [1], [0, 0, 1, 1], [], []>} : vector<8x128xbf16>, vector<128x128xbf16>, vector<8x128xf32> -> vector<8x128xf32>
    %c0_115 = arith.constant 0 : index
    %c0_116 = arith.constant 0 : index
    %246 = vector.load %arg8[%c0_115, %c0_116] : memref<1x128xf32, #tpu.memory_space<vmem>>, vector<1x128xf32>
    %247 = vector.broadcast %246 : vector<1x128xf32> to vector<8x128xf32>
    %248 = arith.addf %245, %247 : vector<8x128xf32>
    %249 = arith.negf %248 : vector<8x128xf32>
    %250 = math.exp %249 : vector<8x128xf32>
    %cst_117 = arith.constant 1.000000e+00 : f32
    %251 = vector.broadcast %cst_117 : f32 to vector<8x128xf32>
    %252 = arith.addf %251, %250 : vector<8x128xf32>
    %253 = arith.divf %251, %252 : vector<8x128xf32>
    %c16_i32_118 = arith.constant 16 : i32
    %254 = tpu.dynamic_rotate %253 by %c16_i32_118 dim 1 : vector<8x128xf32>, i32 -> vector<8x128xf32>
    %255 = arith.mulf %254, %248 : vector<8x128xf32>
    %c64_i32_119 = arith.constant 64 : i32
    %256 = tpu.dynamic_rotate %255 by %c64_i32_119 dim 1 : vector<8x128xf32>, i32 -> vector<8x128xf32>
    %257 = arith.addf %248, %256 : vector<8x128xf32>
    %258 = math.tanh %257 : vector<8x128xf32>
    %cst_120 = arith.constant 1.000000e+00 : f32
    %259 = vector.broadcast %cst_120 : f32 to vector<8x128xf32>
    %260 = arith.subf %259, %254 : vector<8x128xf32>
    %261 = arith.mulf %260, %258 : vector<8x128xf32>
    %262 = arith.mulf %254, %215 : vector<8x128xf32>
    %263 = arith.addf %261, %262 : vector<8x128xf32>
    %cst_121 = arith.constant 0.000000e+00 : f32
    %264 = vector.broadcast %cst_121 : f32 to vector<8x128xf32>
    %265 = arith.select %15, %263, %264 : vector<8x128xi1>, vector<8x128xf32>
    %c40 = arith.constant 40 : index
    %c0_122 = arith.constant 0 : index
    %266 = vector.load %arg17[%c40, %c0_122] : memref<64x128xf32, #tpu.memory_space<vmem>>, vector<8x128xf32>
    %267 = arith.truncf %240 : vector<8x128xf32> to vector<8x128xbf16>
    %c0_123 = arith.constant 0 : index
    %c0_124 = arith.constant 0 : index
    %268 = vector.load %arg5[%c0_123, %c0_124] : memref<128x128xbf16, #tpu.memory_space<vmem>>, vector<128x128xbf16>
    %cst_125 = arith.constant dense<0.000000e+00> : vector<8x128xf32>
    %269 = tpu.matmul %267, %268, %cst_125 {dimension_numbers = #tpu.dot_dimension_numbers<[1], [0], [0], [1], [0, 0, 1, 1], [], []>} : vector<8x128xbf16>, vector<128x128xbf16>, vector<8x128xf32> -> vector<8x128xf32>
    %c0_126 = arith.constant 0 : index
    %c0_127 = arith.constant 0 : index
    %270 = vector.load %arg6[%c0_126, %c0_127] : memref<1x128xf32, #tpu.memory_space<vmem>>, vector<1x128xf32>
    %271 = vector.broadcast %270 : vector<1x128xf32> to vector<8x128xf32>
    %272 = arith.addf %269, %271 : vector<8x128xf32>
    %273 = arith.addf %266, %272 : vector<8x128xf32>
    %274 = arith.negf %273 : vector<8x128xf32>
    %275 = math.exp %274 : vector<8x128xf32>
    %cst_128 = arith.constant 1.000000e+00 : f32
    %276 = vector.broadcast %cst_128 : f32 to vector<8x128xf32>
    %277 = arith.addf %276, %275 : vector<8x128xf32>
    %278 = arith.divf %276, %277 : vector<8x128xf32>
    %c16_i32_129 = arith.constant 16 : i32
    %279 = tpu.dynamic_rotate %278 by %c16_i32_129 dim 1 : vector<8x128xf32>, i32 -> vector<8x128xf32>
    %280 = arith.mulf %279, %273 : vector<8x128xf32>
    %c64_i32_130 = arith.constant 64 : i32
    %281 = tpu.dynamic_rotate %280 by %c64_i32_130 dim 1 : vector<8x128xf32>, i32 -> vector<8x128xf32>
    %282 = arith.addf %273, %281 : vector<8x128xf32>
    %283 = math.tanh %282 : vector<8x128xf32>
    %cst_131 = arith.constant 1.000000e+00 : f32
    %284 = vector.broadcast %cst_131 : f32 to vector<8x128xf32>
    %285 = arith.subf %284, %279 : vector<8x128xf32>
    %286 = arith.mulf %285, %283 : vector<8x128xf32>
    %287 = arith.mulf %279, %240 : vector<8x128xf32>
    %288 = arith.addf %286, %287 : vector<8x128xf32>
    %cst_132 = arith.constant 0.000000e+00 : f32
    %289 = vector.broadcast %cst_132 : f32 to vector<8x128xf32>
    %290 = arith.select %15, %288, %289 : vector<8x128xi1>, vector<8x128xf32>
    %c64_i32_133 = arith.constant 64 : i32
    %291 = tpu.dynamic_rotate %265 by %c64_i32_133 dim 1 : vector<8x128xf32>, i32 -> vector<8x128xf32>
    %292 = arith.addf %290, %291 : vector<8x128xf32>
    %293 = arith.truncf %292 : vector<8x128xf32> to vector<8x128xbf16>
    %c0_134 = arith.constant 0 : index
    %c0_135 = arith.constant 0 : index
    %294 = vector.load %arg7[%c0_134, %c0_135] : memref<128x128xbf16, #tpu.memory_space<vmem>>, vector<128x128xbf16>
    %cst_136 = arith.constant dense<0.000000e+00> : vector<8x128xf32>
    %295 = tpu.matmul %293, %294, %cst_136 {dimension_numbers = #tpu.dot_dimension_numbers<[1], [0], [0], [1], [0, 0, 1, 1], [], []>} : vector<8x128xbf16>, vector<128x128xbf16>, vector<8x128xf32> -> vector<8x128xf32>
    %c0_137 = arith.constant 0 : index
    %c0_138 = arith.constant 0 : index
    %296 = vector.load %arg8[%c0_137, %c0_138] : memref<1x128xf32, #tpu.memory_space<vmem>>, vector<1x128xf32>
    %297 = vector.broadcast %296 : vector<1x128xf32> to vector<8x128xf32>
    %298 = arith.addf %295, %297 : vector<8x128xf32>
    %299 = arith.negf %298 : vector<8x128xf32>
    %300 = math.exp %299 : vector<8x128xf32>
    %cst_139 = arith.constant 1.000000e+00 : f32
    %301 = vector.broadcast %cst_139 : f32 to vector<8x128xf32>
    %302 = arith.addf %301, %300 : vector<8x128xf32>
    %303 = arith.divf %301, %302 : vector<8x128xf32>
    %c16_i32_140 = arith.constant 16 : i32
    %304 = tpu.dynamic_rotate %303 by %c16_i32_140 dim 1 : vector<8x128xf32>, i32 -> vector<8x128xf32>
    %305 = arith.mulf %304, %298 : vector<8x128xf32>
    %c64_i32_141 = arith.constant 64 : i32
    %306 = tpu.dynamic_rotate %305 by %c64_i32_141 dim 1 : vector<8x128xf32>, i32 -> vector<8x128xf32>
    %307 = arith.addf %298, %306 : vector<8x128xf32>
    %308 = math.tanh %307 : vector<8x128xf32>
    %cst_142 = arith.constant 1.000000e+00 : f32
    %309 = vector.broadcast %cst_142 : f32 to vector<8x128xf32>
    %310 = arith.subf %309, %304 : vector<8x128xf32>
    %311 = arith.mulf %310, %308 : vector<8x128xf32>
    %312 = arith.mulf %304, %265 : vector<8x128xf32>
    %313 = arith.addf %311, %312 : vector<8x128xf32>
    %cst_143 = arith.constant 0.000000e+00 : f32
    %314 = vector.broadcast %cst_143 : f32 to vector<8x128xf32>
    %315 = arith.select %15, %313, %314 : vector<8x128xi1>, vector<8x128xf32>
    %c48 = arith.constant 48 : index
    %c0_144 = arith.constant 0 : index
    %316 = vector.load %arg17[%c48, %c0_144] : memref<64x128xf32, #tpu.memory_space<vmem>>, vector<8x128xf32>
    %317 = arith.truncf %290 : vector<8x128xf32> to vector<8x128xbf16>
    %c0_145 = arith.constant 0 : index
    %c0_146 = arith.constant 0 : index
    %318 = vector.load %arg5[%c0_145, %c0_146] : memref<128x128xbf16, #tpu.memory_space<vmem>>, vector<128x128xbf16>
    %cst_147 = arith.constant dense<0.000000e+00> : vector<8x128xf32>
    %319 = tpu.matmul %317, %318, %cst_147 {dimension_numbers = #tpu.dot_dimension_numbers<[1], [0], [0], [1], [0, 0, 1, 1], [], []>} : vector<8x128xbf16>, vector<128x128xbf16>, vector<8x128xf32> -> vector<8x128xf32>
    %c0_148 = arith.constant 0 : index
    %c0_149 = arith.constant 0 : index
    %320 = vector.load %arg6[%c0_148, %c0_149] : memref<1x128xf32, #tpu.memory_space<vmem>>, vector<1x128xf32>
    %321 = vector.broadcast %320 : vector<1x128xf32> to vector<8x128xf32>
    %322 = arith.addf %319, %321 : vector<8x128xf32>
    %323 = arith.addf %316, %322 : vector<8x128xf32>
    %324 = arith.negf %323 : vector<8x128xf32>
    %325 = math.exp %324 : vector<8x128xf32>
    %cst_150 = arith.constant 1.000000e+00 : f32
    %326 = vector.broadcast %cst_150 : f32 to vector<8x128xf32>
    %327 = arith.addf %326, %325 : vector<8x128xf32>
    %328 = arith.divf %326, %327 : vector<8x128xf32>
    %c16_i32_151 = arith.constant 16 : i32
    %329 = tpu.dynamic_rotate %328 by %c16_i32_151 dim 1 : vector<8x128xf32>, i32 -> vector<8x128xf32>
    %330 = arith.mulf %329, %323 : vector<8x128xf32>
    %c64_i32_152 = arith.constant 64 : i32
    %331 = tpu.dynamic_rotate %330 by %c64_i32_152 dim 1 : vector<8x128xf32>, i32 -> vector<8x128xf32>
    %332 = arith.addf %323, %331 : vector<8x128xf32>
    %333 = math.tanh %332 : vector<8x128xf32>
    %cst_153 = arith.constant 1.000000e+00 : f32
    %334 = vector.broadcast %cst_153 : f32 to vector<8x128xf32>
    %335 = arith.subf %334, %329 : vector<8x128xf32>
    %336 = arith.mulf %335, %333 : vector<8x128xf32>
    %337 = arith.mulf %329, %290 : vector<8x128xf32>
    %338 = arith.addf %336, %337 : vector<8x128xf32>
    %cst_154 = arith.constant 0.000000e+00 : f32
    %339 = vector.broadcast %cst_154 : f32 to vector<8x128xf32>
    %340 = arith.select %15, %338, %339 : vector<8x128xi1>, vector<8x128xf32>
    %c64_i32_155 = arith.constant 64 : i32
    %341 = tpu.dynamic_rotate %315 by %c64_i32_155 dim 1 : vector<8x128xf32>, i32 -> vector<8x128xf32>
    %342 = arith.addf %340, %341 : vector<8x128xf32>
    %343 = arith.truncf %342 : vector<8x128xf32> to vector<8x128xbf16>
    %c0_156 = arith.constant 0 : index
    %c0_157 = arith.constant 0 : index
    %344 = vector.load %arg7[%c0_156, %c0_157] : memref<128x128xbf16, #tpu.memory_space<vmem>>, vector<128x128xbf16>
    %cst_158 = arith.constant dense<0.000000e+00> : vector<8x128xf32>
    %345 = tpu.matmul %343, %344, %cst_158 {dimension_numbers = #tpu.dot_dimension_numbers<[1], [0], [0], [1], [0, 0, 1, 1], [], []>} : vector<8x128xbf16>, vector<128x128xbf16>, vector<8x128xf32> -> vector<8x128xf32>
    %c0_159 = arith.constant 0 : index
    %c0_160 = arith.constant 0 : index
    %346 = vector.load %arg8[%c0_159, %c0_160] : memref<1x128xf32, #tpu.memory_space<vmem>>, vector<1x128xf32>
    %347 = vector.broadcast %346 : vector<1x128xf32> to vector<8x128xf32>
    %348 = arith.addf %345, %347 : vector<8x128xf32>
    %349 = arith.negf %348 : vector<8x128xf32>
    %350 = math.exp %349 : vector<8x128xf32>
    %cst_161 = arith.constant 1.000000e+00 : f32
    %351 = vector.broadcast %cst_161 : f32 to vector<8x128xf32>
    %352 = arith.addf %351, %350 : vector<8x128xf32>
    %353 = arith.divf %351, %352 : vector<8x128xf32>
    %c16_i32_162 = arith.constant 16 : i32
    %354 = tpu.dynamic_rotate %353 by %c16_i32_162 dim 1 : vector<8x128xf32>, i32 -> vector<8x128xf32>
    %355 = arith.mulf %354, %348 : vector<8x128xf32>
    %c64_i32_163 = arith.constant 64 : i32
    %356 = tpu.dynamic_rotate %355 by %c64_i32_163 dim 1 : vector<8x128xf32>, i32 -> vector<8x128xf32>
    %357 = arith.addf %348, %356 : vector<8x128xf32>
    %358 = math.tanh %357 : vector<8x128xf32>
    %cst_164 = arith.constant 1.000000e+00 : f32
    %359 = vector.broadcast %cst_164 : f32 to vector<8x128xf32>
    %360 = arith.subf %359, %354 : vector<8x128xf32>
    %361 = arith.mulf %360, %358 : vector<8x128xf32>
    %362 = arith.mulf %354, %315 : vector<8x128xf32>
    %363 = arith.addf %361, %362 : vector<8x128xf32>
    %cst_165 = arith.constant 0.000000e+00 : f32
    %364 = vector.broadcast %cst_165 : f32 to vector<8x128xf32>
    %365 = arith.select %15, %363, %364 : vector<8x128xi1>, vector<8x128xf32>
    %c56 = arith.constant 56 : index
    %c0_166 = arith.constant 0 : index
    %366 = vector.load %arg17[%c56, %c0_166] : memref<64x128xf32, #tpu.memory_space<vmem>>, vector<8x128xf32>
    %367 = arith.truncf %340 : vector<8x128xf32> to vector<8x128xbf16>
    %c0_167 = arith.constant 0 : index
    %c0_168 = arith.constant 0 : index
    %368 = vector.load %arg5[%c0_167, %c0_168] : memref<128x128xbf16, #tpu.memory_space<vmem>>, vector<128x128xbf16>
    %cst_169 = arith.constant dense<0.000000e+00> : vector<8x128xf32>
    %369 = tpu.matmul %367, %368, %cst_169 {dimension_numbers = #tpu.dot_dimension_numbers<[1], [0], [0], [1], [0, 0, 1, 1], [], []>} : vector<8x128xbf16>, vector<128x128xbf16>, vector<8x128xf32> -> vector<8x128xf32>
    %c0_170 = arith.constant 0 : index
    %c0_171 = arith.constant 0 : index
    %370 = vector.load %arg6[%c0_170, %c0_171] : memref<1x128xf32, #tpu.memory_space<vmem>>, vector<1x128xf32>
    %371 = vector.broadcast %370 : vector<1x128xf32> to vector<8x128xf32>
    %372 = arith.addf %369, %371 : vector<8x128xf32>
    %373 = arith.addf %366, %372 : vector<8x128xf32>
    %374 = arith.negf %373 : vector<8x128xf32>
    %375 = math.exp %374 : vector<8x128xf32>
    %cst_172 = arith.constant 1.000000e+00 : f32
    %376 = vector.broadcast %cst_172 : f32 to vector<8x128xf32>
    %377 = arith.addf %376, %375 : vector<8x128xf32>
    %378 = arith.divf %376, %377 : vector<8x128xf32>
    %c16_i32_173 = arith.constant 16 : i32
    %379 = tpu.dynamic_rotate %378 by %c16_i32_173 dim 1 : vector<8x128xf32>, i32 -> vector<8x128xf32>
    %380 = arith.mulf %379, %373 : vector<8x128xf32>
    %c64_i32_174 = arith.constant 64 : i32
    %381 = tpu.dynamic_rotate %380 by %c64_i32_174 dim 1 : vector<8x128xf32>, i32 -> vector<8x128xf32>
    %382 = arith.addf %373, %381 : vector<8x128xf32>
    %383 = math.tanh %382 : vector<8x128xf32>
    %cst_175 = arith.constant 1.000000e+00 : f32
    %384 = vector.broadcast %cst_175 : f32 to vector<8x128xf32>
    %385 = arith.subf %384, %379 : vector<8x128xf32>
    %386 = arith.mulf %385, %383 : vector<8x128xf32>
    %387 = arith.mulf %379, %340 : vector<8x128xf32>
    %388 = arith.addf %386, %387 : vector<8x128xf32>
    %cst_176 = arith.constant 0.000000e+00 : f32
    %389 = vector.broadcast %cst_176 : f32 to vector<8x128xf32>
    %390 = arith.select %15, %388, %389 : vector<8x128xi1>, vector<8x128xf32>
    %c64_i32_177 = arith.constant 64 : i32
    %391 = tpu.dynamic_rotate %365 by %c64_i32_177 dim 1 : vector<8x128xf32>, i32 -> vector<8x128xf32>
    %392 = arith.addf %390, %391 : vector<8x128xf32>
    %393 = arith.truncf %392 : vector<8x128xf32> to vector<8x128xbf16>
    %c0_178 = arith.constant 0 : index
    %c0_179 = arith.constant 0 : index
    %394 = vector.load %arg7[%c0_178, %c0_179] : memref<128x128xbf16, #tpu.memory_space<vmem>>, vector<128x128xbf16>
    %cst_180 = arith.constant dense<0.000000e+00> : vector<8x128xf32>
    %395 = tpu.matmul %393, %394, %cst_180 {dimension_numbers = #tpu.dot_dimension_numbers<[1], [0], [0], [1], [0, 0, 1, 1], [], []>} : vector<8x128xbf16>, vector<128x128xbf16>, vector<8x128xf32> -> vector<8x128xf32>
    %c0_181 = arith.constant 0 : index
    %c0_182 = arith.constant 0 : index
    %396 = vector.load %arg8[%c0_181, %c0_182] : memref<1x128xf32, #tpu.memory_space<vmem>>, vector<1x128xf32>
    %397 = vector.broadcast %396 : vector<1x128xf32> to vector<8x128xf32>
    %398 = arith.addf %395, %397 : vector<8x128xf32>
    %399 = arith.negf %398 : vector<8x128xf32>
    %400 = math.exp %399 : vector<8x128xf32>
    %cst_183 = arith.constant 1.000000e+00 : f32
    %401 = vector.broadcast %cst_183 : f32 to vector<8x128xf32>
    %402 = arith.addf %401, %400 : vector<8x128xf32>
    %403 = arith.divf %401, %402 : vector<8x128xf32>
    %c16_i32_184 = arith.constant 16 : i32
    %404 = tpu.dynamic_rotate %403 by %c16_i32_184 dim 1 : vector<8x128xf32>, i32 -> vector<8x128xf32>
    %405 = arith.mulf %404, %398 : vector<8x128xf32>
    %c64_i32_185 = arith.constant 64 : i32
    %406 = tpu.dynamic_rotate %405 by %c64_i32_185 dim 1 : vector<8x128xf32>, i32 -> vector<8x128xf32>
    %407 = arith.addf %398, %406 : vector<8x128xf32>
    %408 = math.tanh %407 : vector<8x128xf32>
    %cst_186 = arith.constant 1.000000e+00 : f32
    %409 = vector.broadcast %cst_186 : f32 to vector<8x128xf32>
    %410 = arith.subf %409, %404 : vector<8x128xf32>
    %411 = arith.mulf %410, %408 : vector<8x128xf32>
    %412 = arith.mulf %404, %365 : vector<8x128xf32>
    %413 = arith.addf %411, %412 : vector<8x128xf32>
    %cst_187 = arith.constant 0.000000e+00 : f32
    %414 = vector.broadcast %cst_187 : f32 to vector<8x128xf32>
    %415 = arith.select %15, %413, %414 : vector<8x128xi1>, vector<8x128xf32>
    %416 = arith.truncf %415 : vector<8x128xf32> to vector<8x128xbf16>
    %c0_188 = arith.constant 0 : index
    %c0_189 = arith.constant 0 : index
    %417 = vector.load %arg9[%c0_188, %c0_189] : memref<128x128xbf16, #tpu.memory_space<vmem>>, vector<128x128xbf16>
    %cst_190 = arith.constant dense<0.000000e+00> : vector<8x128xf32>
    %418 = tpu.matmul %416, %417, %cst_190 {dimension_numbers = #tpu.dot_dimension_numbers<[1], [0], [0], [1], [0, 0, 1, 1], [], []>} : vector<8x128xbf16>, vector<128x128xbf16>, vector<8x128xf32> -> vector<8x128xf32>
    %c0_191 = arith.constant 0 : index
    %c0_192 = arith.constant 0 : index
    %419 = vector.load %arg10[%c0_191, %c0_192] : memref<1x128xf32, #tpu.memory_space<vmem>>, vector<1x128xf32>
    %420 = vector.broadcast %419 : vector<1x128xf32> to vector<8x128xf32>
    %421 = arith.addf %418, %420 : vector<8x128xf32>
    %cst_193 = arith.constant 0.000000e+00 : f32
    %422 = vector.broadcast %cst_193 : f32 to vector<8x128xf32>
    %423 = arith.maximumf %421, %422 : vector<8x128xf32>
    %424 = arith.truncf %423 : vector<8x128xf32> to vector<8x128xbf16>
    %c0_194 = arith.constant 0 : index
    %c0_195 = arith.constant 0 : index
    %425 = vector.load %arg11[%c0_194, %c0_195] : memref<128x128xbf16, #tpu.memory_space<vmem>>, vector<128x128xbf16>
    %cst_196 = arith.constant dense<0.000000e+00> : vector<8x128xf32>
    %426 = tpu.matmul %424, %425, %cst_196 {dimension_numbers = #tpu.dot_dimension_numbers<[1], [0], [0], [1], [0, 0, 1, 1], [], []>} : vector<8x128xbf16>, vector<128x128xbf16>, vector<8x128xf32> -> vector<8x128xf32>
    %c0_197 = arith.constant 0 : index
    %c0_198 = arith.constant 0 : index
    %427 = vector.load %arg12[%c0_197, %c0_198] : memref<1x128xf32, #tpu.memory_space<vmem>>, vector<1x128xf32>
    %428 = vector.broadcast %427 : vector<1x128xf32> to vector<8x128xf32>
    %429 = arith.addf %426, %428 : vector<8x128xf32>
    %cst_199 = arith.constant 0.000000e+00 : f32
    %430 = vector.broadcast %cst_199 : f32 to vector<8x128xf32>
    %431 = arith.maximumf %429, %430 : vector<8x128xf32>
    %432 = arith.truncf %431 : vector<8x128xf32> to vector<8x128xbf16>
    %c0_200 = arith.constant 0 : index
    %c0_201 = arith.constant 0 : index
    %433 = vector.load %arg13[%c0_200, %c0_201] : memref<128x128xbf16, #tpu.memory_space<vmem>>, vector<128x128xbf16>
    %cst_202 = arith.constant dense<0.000000e+00> : vector<8x128xf32>
    %434 = tpu.matmul %432, %433, %cst_202 {dimension_numbers = #tpu.dot_dimension_numbers<[1], [0], [0], [1], [0, 0, 1, 1], [], []>} : vector<8x128xbf16>, vector<128x128xbf16>, vector<8x128xf32> -> vector<8x128xf32>
    %c0_203 = arith.constant 0 : index
    %c0_204 = arith.constant 0 : index
    %435 = vector.load %arg14[%c0_203, %c0_204] : memref<1x128xf32, #tpu.memory_space<vmem>>, vector<1x128xf32>
    %436 = vector.broadcast %435 : vector<1x128xf32> to vector<8x128xf32>
    %437 = arith.addf %434, %436 : vector<8x128xf32>
    %c0_205 = arith.constant 0 : index
    %c0_206 = arith.constant 0 : index
    %438 = vector.load %arg15[%c0_205, %c0_206] : memref<8x128xf32, #tpu.memory_space<vmem>>, vector<8x128xf32>
    tpu.vector_store %arg15[%c0_205, %c0_206], %437 {strides = array<i32>} : memref<8x128xf32, #tpu.memory_space<vmem>>, vector<8x128xf32>,
    %c0_207 = arith.constant 0 : index
    %c0_208 = arith.constant 0 : index
    %c0_209 = arith.constant 0 : index
    %439 = vector.load %arg16[%c0_207, %c0_208, %c0_209] : memref<2x8x128xf32, #tpu.memory_space<vmem>>, vector<1x8x128xf32>
    %440 = vector.shape_cast %439 : vector<1x8x128xf32> to vector<8x128xf32>
    %441 = vector.shape_cast %390 : vector<8x128xf32> to vector<1x8x128xf32>
    tpu.vector_store %arg16[%c0_207, %c0_208, %c0_209], %441 {strides = array<i32>} : memref<2x8x128xf32, #tpu.memory_space<vmem>>, vector<1x8x128xf32>,
    %c1_210 = arith.constant 1 : index
    %c0_211 = arith.constant 0 : index
    %c0_212 = arith.constant 0 : index
    %442 = vector.load %arg16[%c1_210, %c0_211, %c0_212] : memref<2x8x128xf32, #tpu.memory_space<vmem>>, vector<1x8x128xf32>
    %443 = vector.shape_cast %442 : vector<1x8x128xf32> to vector<8x128xf32>
    %444 = vector.shape_cast %415 : vector<8x128xf32> to vector<1x8x128xf32>
    tpu.vector_store %arg16[%c1_210, %c0_211, %c0_212], %444 {strides = array<i32>} : memref<2x8x128xf32, #tpu.memory_space<vmem>>, vector<1x8x128xf32>,
    return
  }
  func.func @transform_0(%arg0: i32) -> (i32, i32, i32) {
    %c0_i32 = arith.constant 0 : i32
    %c0_i32_0 = arith.constant 0 : i32
    %c0_i32_1 = arith.constant 0 : i32
    return %c0_i32, %arg0, %c0_i32_0 : i32, i32, i32
  }
  func.func @transform_1(%arg0: i32) -> (i32, i32, i32) {
    %c0_i32 = arith.constant 0 : i32
    %c0_i32_0 = arith.constant 0 : i32
    %c0_i32_1 = arith.constant 0 : i32
    return %c0_i32, %arg0, %c0_i32_0 : i32, i32, i32
  }
  func.func @transform_2(%arg0: i32) -> (i32, i32) {
    %c0_i32 = arith.constant 0 : i32
    %c0_i32_0 = arith.constant 0 : i32
    %c0_i32_1 = arith.constant 0 : i32
    return %c0_i32, %c0_i32_0 : i32, i32
  }
  func.func @transform_3(%arg0: i32) -> (i32, i32) {
    %c0_i32 = arith.constant 0 : i32
    %c0_i32_0 = arith.constant 0 : i32
    %c0_i32_1 = arith.constant 0 : i32
    return %c0_i32, %c0_i32_0 : i32, i32
  }
  func.func @transform_4(%arg0: i32) -> (i32, i32) {
    %c0_i32 = arith.constant 0 : i32
    %c0_i32_0 = arith.constant 0 : i32
    %c0_i32_1 = arith.constant 0 : i32
    return %c0_i32, %c0_i32_0 : i32, i32
  }
  func.func @transform_5(%arg0: i32) -> (i32, i32) {
    %c0_i32 = arith.constant 0 : i32
    %c0_i32_0 = arith.constant 0 : i32
    %c0_i32_1 = arith.constant 0 : i32
    return %c0_i32, %c0_i32_0 : i32, i32
  }
  func.func @transform_6(%arg0: i32) -> (i32, i32) {
    %c0_i32 = arith.constant 0 : i32
    %c0_i32_0 = arith.constant 0 : i32
    %c0_i32_1 = arith.constant 0 : i32
    return %c0_i32, %c0_i32_0 : i32, i32
  }
  func.func @transform_7(%arg0: i32) -> (i32, i32) {
    %c0_i32 = arith.constant 0 : i32
    %c0_i32_0 = arith.constant 0 : i32
    %c0_i32_1 = arith.constant 0 : i32
    return %c0_i32, %c0_i32_0 : i32, i32
  }
  func.func @transform_8(%arg0: i32) -> (i32, i32) {
    %c0_i32 = arith.constant 0 : i32
    %c0_i32_0 = arith.constant 0 : i32
    %c0_i32_1 = arith.constant 0 : i32
    return %c0_i32, %c0_i32_0 : i32, i32
  }
  func.func @transform_9(%arg0: i32) -> (i32, i32) {
    %c0_i32 = arith.constant 0 : i32
    %c0_i32_0 = arith.constant 0 : i32
    %c0_i32_1 = arith.constant 0 : i32
    return %c0_i32, %c0_i32_0 : i32, i32
  }
  func.func @transform_10(%arg0: i32) -> (i32, i32) {
    %c0_i32 = arith.constant 0 : i32
    %c0_i32_0 = arith.constant 0 : i32
    %c0_i32_1 = arith.constant 0 : i32
    return %c0_i32, %c0_i32_0 : i32, i32
  }
  func.func @transform_11(%arg0: i32) -> (i32, i32) {
    %c0_i32 = arith.constant 0 : i32
    %c0_i32_0 = arith.constant 0 : i32
    %c0_i32_1 = arith.constant 0 : i32
    return %c0_i32, %c0_i32_0 : i32, i32
  }
  func.func @transform_12(%arg0: i32) -> (i32, i32) {
    %c0_i32 = arith.constant 0 : i32
    %c0_i32_0 = arith.constant 0 : i32
    %c0_i32_1 = arith.constant 0 : i32
    return %c0_i32, %c0_i32_0 : i32, i32
  }
  func.func @transform_13(%arg0: i32) -> (i32, i32) {
    %c0_i32 = arith.constant 0 : i32
    %c0_i32_0 = arith.constant 0 : i32
    %c0_i32_1 = arith.constant 0 : i32
    return %c0_i32, %c0_i32_0 : i32, i32
  }
  func.func @transform_14(%arg0: i32) -> (i32, i32) {
    %c0_i32 = arith.constant 0 : i32
    %c0_i32_0 = arith.constant 0 : i32
    return %arg0, %c0_i32 : i32, i32
  }
  func.func @transform_15(%arg0: i32) -> (i32, i32, i32) {
    %c0_i32 = arith.constant 0 : i32
    %c0_i32_0 = arith.constant 0 : i32
    %c0_i32_1 = arith.constant 0 : i32
    return %c0_i32, %arg0, %c0_i32_0 : i32, i32, i32
  }
}

</mosaic_0001>

<llo_original>
// kernel: recn_forward.1
$region0: #{recn_forward.1}
  #allocation0 [shape = 'u32[]', space=smem, size = 0x4, offset = 0x4, fixed_abs, tag = 'smem constant byte address 0x4 - core index']
  #allocation1 [shape = 'u32[144,128]{1,0:T(1,128)}', space=vmem, size = 0x12000, scoped, tag = 'internal scratch']
  #allocation2 [shape = 'f32[64,128]{1,0:T(8,128)}', space=vmem, size = 0x8000, scoped, tag = 'scratch operand']
  %s0 = inlined_call_operand.vmem [shape: f32[8,8,128], index: 0, kind: input, shape index: {}]
  %s1 = inlined_call_operand.vmem [shape: f32[2,8,128], index: 1, kind: input, shape index: {}]
  %s2 = inlined_call_operand.vmem [shape: bf16[128,128], index: 2, kind: input, shape index: {}]
  %s3 = inlined_call_operand.vmem [shape: f32[1,128], index: 3, kind: input, shape index: {}]
  %s4 = inlined_call_operand.vmem [shape: bf16[128,128], index: 4, kind: input, shape index: {}]
  %s5 = inlined_call_operand.vmem [shape: f32[1,128], index: 5, kind: input, shape index: {}]
  %s6 = inlined_call_operand.hbm [shape: bf16[128,128], index: 6, kind: input, shape index: {}]
  %s7 = inlined_call_operand.vmem [shape: f32[1,128], index: 7, kind: input, shape index: {}]
  %s8 = inlined_call_operand.hbm [shape: bf16[128,128], index: 8, kind: input, shape index: {}]
  %s9 = inlined_call_operand.vmem [shape: f32[1,128], index: 9, kind: input, shape index: {}]
  %s10 = inlined_call_operand.hbm [shape: bf16[128,128], index: 10, kind: input, shape index: {}]
  %s11 = inlined_call_operand.vmem [shape: f32[1,128], index: 11, kind: input, shape index: {}]
  %s12 = inlined_call_operand.hbm [shape: bf16[128,128], index: 12, kind: input, shape index: {}]
  %s13 = inlined_call_operand.vmem [shape: f32[1,128], index: 13, kind: input, shape index: {}]
  %s14 = inlined_call_operand.vmem [shape: f32[8,128], index: 14, kind: output, shape index: {0}]
  %s15 = inlined_call_operand.vmem [shape: f32[2,8,128], index: 15, kind: output, shape index: {1}]
  %16 = xla_tuple %s14, %s15
  %s17 = sld [smem:[#allocation0]]
  $region90: #{recn_forward.1} parent=0
    _
  %s19 = ssub.s32 1, %s17
  %s20 = scalar_select 0, %s19, %s17
  $region1: #{recn_forward.1} parent=0
    #allocation3 [shape = 'u8[32768]{0}', space=vmem, size = 0x8000, scoped, tag = 'input window, operand 6, single buffered']
    #allocation4 [shape = 's32[1]{0}', space=sflag, size = 0x4, scoped, tag = 'scoped memory for recn_forward.1']
    #allocation5 [shape = 'u8[32768]{0}', space=vmem, size = 0x8000, scoped, tag = 'input window, operand 8, single buffered']
    #allocation6 [shape = 's32[1]{0}', space=sflag, size = 0x4, scoped, tag = 'scoped memory for recn_forward.1']
    #allocation7 [shape = 'u8[32768]{0}', space=vmem, size = 0x8000, scoped, tag = 'input window, operand 10, single buffered']
    #allocation8 [shape = 'u8[32768]{0}', space=vmem, size = 0x8000, scoped, tag = 'input window, operand 12, single buffered']
    #allocation9 [shape = 's32[1]{0}', space=sflag, size = 0x4, scoped, tag = 'scoped memory for recn_forward.1']
    %21 = vsyncpa [#allocation4], 0
    %22 = vsyncpa [#allocation6], 0
    %23 = vsyncpa [#allocation9], 0
    // Predicated region
    $region2: #{recn_forward.1} parent=1 // pred_check
      _
    $region3: #{recn_forward.1} parent=1 // pred_check_branch
      %25 = sbr.rel (0) target = $region5
    $region4: #{recn_forward.1} parent=1 // pred_region
      _
    $region5: #{recn_forward.1} parent=1 // pred_fallthru
      _
    // Predicated region
    $region6: #{recn_forward.1} parent=1 // pred_check
      _
    $region7: #{recn_forward.1} parent=1 // pred_check_branch
      %27 = sbr.rel (0) target = $region9
    $region8: #{recn_forward.1} parent=1 // pred_region
      _
    $region9: #{recn_forward.1} parent=1 // pred_fallthru
      _
    // Predicated region
    $region10: #{recn_forward.1} parent=1 // pred_check
      _
    $region11: #{recn_forward.1} parent=1 // pred_check_branch
      %29 = sbr.rel (0) target = $region13
    $region12: #{recn_forward.1} parent=1 // pred_region
      _
    $region13: #{recn_forward.1} parent=1 // pred_fallthru
      _
    // Predicated region
    $region14: #{recn_forward.1} parent=1 // pred_check
      _
    $region15: #{recn_forward.1} parent=1 // pred_check_branch
      %31 = sbr.rel (0) target = $region17
    $region16: #{recn_forward.1} parent=1 // pred_region
      _
    $region17: #{recn_forward.1} parent=1 // pred_fallthru
      _
    // Predicated region
    $region18: #{recn_forward.1} parent=1 // pred_check
      _
    $region19: #{recn_forward.1} parent=1 // pred_check_branch
      %33 = sbr.rel (0) target = $region21
    $region20: #{recn_forward.1} parent=1 // pred_region
      _
    $region21: #{recn_forward.1} parent=1 // pred_fallthru
      _
    // Predicated region
    $region22: #{recn_forward.1} parent=1 // pred_check
      _
    $region23: #{recn_forward.1} parent=1 // pred_check_branch
      %35 = sbr.rel (0) target = $region25
    $region24: #{recn_forward.1} parent=1 // pred_region
      _
    $region25: #{recn_forward.1} parent=1 // pred_fallthru
      _
    // Predicated region
    $region26: #{recn_forward.1} parent=1 // pred_check
      _
    $region27: #{recn_forward.1} parent=1 // pred_check_branch
      %37 = sbr.rel (0) target = $region29
    $region28: #{recn_forward.1} parent=1 // pred_region
      %s39 = ssub.s32 1024, 1024
      %40 = vsyncadd [#allocation4], %s39
      %s41 = sshll.u32 [#allocation3], 4
      %s42 = int_to_ptr.vmem [resolvable:$true] %s41
      %47 = dma.hbm_to_vmem [thread:$0]  %s6, 1024, %s42, [#allocation4], 64, 64, 4
    $region29: #{recn_forward.1} parent=1 // pred_fallthru
      _
    // Predicated region
    $region30: #{recn_forward.1} parent=1 // pred_check
      _
    $region31: #{recn_forward.1} parent=1 // pred_check_branch
      %49 = sbr.rel (0) target = $region33
    $region32: #{recn_forward.1} parent=1 // pred_region
      _
    $region33: #{recn_forward.1} parent=1 // pred_fallthru
      _
    // Predicated region
    $region34: #{recn_forward.1} parent=1 // pred_check
      _
    $region35: #{recn_forward.1} parent=1 // pred_check_branch
      %51 = sbr.rel (0) target = $region37
    $region36: #{recn_forward.1} parent=1 // pred_region
      %s53 = ssub.s32 1024, 1024
      %54 = vsyncadd [#allocation6], %s53
      %s55 = sshll.u32 [#allocation5], 4
      %s56 = int_to_ptr.vmem [resolvable:$true] %s55
      %61 = dma.hbm_to_vmem [thread:$0]  %s8, 1024, %s56, [#allocation6], 64, 64, 4
    $region37: #{recn_forward.1} parent=1 // pred_fallthru
      _
    // Predicated region
    $region38: #{recn_forward.1} parent=1 // pred_check
      _
    $region39: #{recn_forward.1} parent=1 // pred_check_branch
      %63 = sbr.rel (0) target = $region41
    $region40: #{recn_forward.1} parent=1 // pred_region
      _
    $region41: #{recn_forward.1} parent=1 // pred_fallthru
      _
    // Predicated region
    $region42: #{recn_forward.1} parent=1 // pred_check
      _
    $region43: #{recn_forward.1} parent=1 // pred_check_branch
      %65 = sbr.rel (0) target = $region45
    $region44: #{recn_forward.1} parent=1 // pred_region
      %s67 = ssub.s32 1024, 1024
      %68 = vsyncadd [#allocation6], %s67
      %s69 = sshll.u32 [#allocation7], 4
      %s70 = int_to_ptr.vmem [resolvable:$true] %s69
      %75 = dma.hbm_to_vmem [thread:$0]  %s10, 1024, %s70, [#allocation6], 64, 64, 4
    $region45: #{recn_forward.1} parent=1 // pred_fallthru
      _
    // Predicated region
    $region46: #{recn_forward.1} parent=1 // pred_check
      _
    $region47: #{recn_forward.1} parent=1 // pred_check_branch
      %77 = sbr.rel (0) target = $region49
    $region48: #{recn_forward.1} parent=1 // pred_region
      _
    $region49: #{recn_forward.1} parent=1 // pred_fallthru
      _
    // Predicated region
    $region50: #{recn_forward.1} parent=1 // pred_check
      _
    $region51: #{recn_forward.1} parent=1 // pred_check_branch
      %79 = sbr.rel (0) target = $region53
    $region52: #{recn_forward.1} parent=1 // pred_region
      %s81 = ssub.s32 1024, 1024
      %82 = vsyncadd [#allocation9], %s81
      %s83 = sshll.u32 [#allocation8], 4
      %s84 = int_to_ptr.vmem [resolvable:$true] %s83
      %89 = dma.hbm_to_vmem [thread:$0]  %s12, 1024, %s84, [#allocation9], 64, 64, 4
    $region53: #{recn_forward.1} parent=1 // pred_fallthru
      _
    // Predicated region
    $region54: #{recn_forward.1} parent=1 // pred_check
      _
    $region55: #{recn_forward.1} parent=1 // pred_check_branch
      %91 = sbr.rel (0) target = $region57
    $region56: #{recn_forward.1} parent=1 // pred_region
      _
    $region57: #{recn_forward.1} parent=1 // pred_fallthru
      _
    // Predicated region
    $region58: #{recn_forward.1} parent=1 // pred_check
      _
    $region59: #{recn_forward.1} parent=1 // pred_check_branch
      %93 = sbr.rel (0) target = $region61
    $region60: #{recn_forward.1} parent=1 // pred_region
      %94 = dma.done [#allocation4], 1024
    $region61: #{recn_forward.1} parent=1 // pred_fallthru
      _
    // Predicated region
    $region62: #{recn_forward.1} parent=1 // pred_check
      _
    $region63: #{recn_forward.1} parent=1 // pred_check_branch
      %96 = sbr.rel (0) target = $region65
    $region64: #{recn_forward.1} parent=1 // pred_region
      %97 = dma.done [#allocation6], 1024
    $region65: #{recn_forward.1} parent=1 // pred_fallthru
      _
    // Predicated region
    $region66: #{recn_forward.1} parent=1 // pred_check
      _
    $region67: #{recn_forward.1} parent=1 // pred_check_branch
      %99 = sbr.rel (0) target = $region69
    $region68: #{recn_forward.1} parent=1 // pred_region
      %100 = dma.done [#allocation6], 1024
    $region69: #{recn_forward.1} parent=1 // pred_fallthru
      _
    // Predicated region
    $region70: #{recn_forward.1} parent=1 // pred_check
      _
    $region71: #{recn_forward.1} parent=1 // pred_check_branch
      %102 = sbr.rel (0) target = $region73
    $region72: #{recn_forward.1} parent=1 // pred_region
      %103 = dma.done [#allocation9], 1024
    $region73: #{recn_forward.1} parent=1 // pred_fallthru
      _
    %v105 = vld [vmem:[%s0] sm:$0xff]
    %v106 = vld [vmem:[%s0 + $0x8] sm:$0xff]
    %v107 = vld [vmem:[%s0 + $0x10] sm:$0xff]
    %v108 = vld [vmem:[%s0 + $0x18] sm:$0xff]
    %v109 = vld [vmem:[%s0 + $0x20] sm:$0xff]
    %v110 = vld [vmem:[%s0 + $0x28] sm:$0xff]
    %v111 = vld [vmem:[%s0 + $0x30] sm:$0xff]
    %v112 = vld [vmem:[%s0 + $0x38] sm:$0xff]
    %v113 = vpack.c.bf16 %v106, %v105
    %v114 = vpack.c.bf16 %v108, %v107
    %v115 = vpack.c.bf16 %v110, %v109
    %v116 = vpack.c.bf16 %v112, %v111
    %v117 = vld [vmem:[%s2] sm:$0xf]
    %v118 = vld [vmem:[%s2 + $0x4] sm:$0xf]
    %v119 = vld [vmem:[%s2 + $0x8] sm:$0xf]
    %v120 = vld [vmem:[%s2 + $0xc] sm:$0xf]
    %v121 = vld [vmem:[%s2 + $0x10] sm:$0xf]
    %v122 = vld [vmem:[%s2 + $0x14] sm:$0xf]
    %v123 = vld [vmem:[%s2 + $0x18] sm:$0xf]
    %v124 = vld [vmem:[%s2 + $0x1c] sm:$0xf]
    %v125 = vld [vmem:[%s2 + $0x20] sm:$0xf]
    %v126 = vld [vmem:[%s2 + $0x24] sm:$0xf]
    %v127 = vld [vmem:[%s2 + $0x28] sm:$0xf]
    %v128 = vld [vmem:[%s2 + $0x2c] sm:$0xf]
    %v129 = vld [vmem:[%s2 + $0x30] sm:$0xf]
    %v130 = vld [vmem:[%s2 + $0x34] sm:$0xf]
    %v131 = vld [vmem:[%s2 + $0x38] sm:$0xf]
    %v132 = vld [vmem:[%s2 + $0x3c] sm:$0xf]
    %v133 = vld [vmem:[%s3] sm:$0x1]
    %v135 = vlaneseq
    %v136 = vshrl.u32 %v135, 7
    %v137 = vsub.s32 0, %v136
    %v138 = vrot.slane %v133, %v137
    %v156 = vunpack.c.l.b16 %v117
    %v157 = vunpack.c.l.b16 %v118
    %v158 = vunpack.c.l.b16 %v119
    %v159 = vunpack.c.l.b16 %v120
    %v160 = vunpack.c.l.b16 %v121
    %v161 = vunpack.c.l.b16 %v122
    %v162 = vunpack.c.l.b16 %v123
    %v163 = vunpack.c.l.b16 %v124
    %v164 = vunpack.c.l.b16 %v125
    %v165 = vunpack.c.l.b16 %v126
    %v166 = vunpack.c.l.b16 %v127
    %v167 = vunpack.c.l.b16 %v128
    %v168 = vunpack.c.l.b16 %v129
    %v169 = vunpack.c.l.b16 %v130
    %v170 = vunpack.c.l.b16 %v131
    %v171 = vunpack.c.l.b16 %v132
    %v172 = vpack.c.b16 %v157, %v156
    %v173 = vpack.c.b16 %v159, %v158
    %v174 = vpack.c.b16 %v161, %v160
    %v175 = vpack.c.b16 %v163, %v162
    %v176 = vpack.c.b16 %v165, %v164
    %v177 = vpack.c.b16 %v167, %v166
    %v178 = vpack.c.b16 %v169, %v168
    %v179 = vpack.c.b16 %v171, %v170
    %188 = vmatprep.subr.bf16.mxu0 0
    %189 = vmatpush1.bf16.msra.mxu0 %v172
    %190 = vmatprep.subr.bf16.mxu0 0
    %191 = vmatpush1.bf16.msra.mxu0 %v173
    %192 = vmatprep.subr.bf16.mxu0 0
    %193 = vmatpush1.bf16.msra.mxu0 %v174
    %194 = vmatprep.subr.bf16.mxu0 0
    %195 = vmatpush1.bf16.msra.mxu0 %v175
    %196 = vmatprep.subr.bf16.mxu0 0
    %197 = vmatpush1.bf16.msra.mxu0 %v176
    %198 = vmatprep.subr.bf16.mxu0 0
    %199 = vmatpush1.bf16.msra.mxu0 %v177
    %200 = vmatprep.subr.bf16.mxu0 0
    %201 = vmatpush1.bf16.msra.mxu0 %v178
    %202 = vmatprep.subr.bf16.mxu0 0
    %203 = vmatpush1.bf16.msra.mxu0 %v179
    %204 = vmatprep.subr.bf16.mxu0 0
    %205 = vmatpush1.bf16.msra.mxu0 0
    %206 = vmatprep.subr.bf16.mxu0 0
    %207 = vmatpush1.bf16.msra.mxu0 0
    %208 = vmatprep.subr.bf16.mxu0 0
    %209 = vmatpush1.bf16.msra.mxu0 0
    %210 = vmatprep.subr.bf16.mxu0 0
    %211 = vmatpush1.bf16.msra.mxu0 0
    %212 = vmatprep.subr.bf16.mxu0 0
    %213 = vmatpush1.bf16.msra.mxu0 0
    %214 = vmatprep.subr.bf16.mxu0 0
    %215 = vmatpush1.bf16.msra.mxu0 0
    %216 = vmatprep.subr.bf16.mxu0 0
    %217 = vmatpush1.bf16.msra.mxu0 0
    %218 = vmatprep.subr.bf16.mxu0 0
    %219 = vmatpush1.bf16.msra.mxu0 0
    %220 = vmatprep.mubr.bf16.mxu0 0
    %221 = vmatmul.mubr.bf16.gmra.mrb[0].mxu0 %v113
    %v222 = vpop.f32.mrb[0].mxu0
    %v223 = vadd.f32 %v138, %v222
    %v224 = vpop.f32.mrb[0].mxu0
    %v225 = vpop.f32.mrb[0].mxu0
    %v226 = vadd.f32 %v138, %v225
    %v227 = vpop.f32.mrb[0].mxu0
    %228 = vmatprep.mubr.bf16.mxu0 0
    %229 = vmatmul.mubr.bf16.gmra.mrb[0].mxu0 %v114
    %v230 = vpop.f32.mrb[0].mxu0
    %v231 = vadd.f32 %v138, %v230
    %v232 = vpop.f32.mrb[0].mxu0
    %v233 = vpop.f32.mrb[0].mxu0
    %v234 = vadd.f32 %v138, %v233
    %v235 = vpop.f32.mrb[0].mxu0
    %236 = vmatprep.mubr.bf16.mxu0 0
    %237 = vmatmul.mubr.bf16.gmra.mrb[0].mxu0 %v115
    %v238 = vpop.f32.mrb[0].mxu0
    %v239 = vadd.f32 %v138, %v238
    %v240 = vpop.f32.mrb[0].mxu0
    %v241 = vpop.f32.mrb[0].mxu0
    %v242 = vadd.f32 %v138, %v241
    %v243 = vpop.f32.mrb[0].mxu0
    %244 = vmatprep.mubr.bf16.mxu0 0
    %245 = vmatmul.mubr.bf16.gmra.mrb[0].mxu0 %v116
    %v246 = vpop.f32.mrb[0].mxu0
    %v247 = vadd.f32 %v138, %v246
    %v248 = vpop.f32.mrb[0].mxu0
    %v249 = vpop.f32.mrb[0].mxu0
    %v250 = vadd.f32 %v138, %v249
    %v251 = vpop.f32.mrb[0].mxu0
    %252 = vdwg.mxu0
    %253 = vst [vmem:[#allocation2] sm:$0xff] %v223
    %254 = vst [vmem:[#allocation2 + $0x8] sm:$0xff] %v226
    %255 = vst [vmem:[#allocation2 + $0x10] sm:$0xff] %v231
    %256 = vst [vmem:[#allocation2 + $0x18] sm:$0xff] %v234
    %257 = vst [vmem:[#allocation2 + $0x20] sm:$0xff] %v239
    %258 = vst [vmem:[#allocation2 + $0x28] sm:$0xff] %v242
    %259 = vst [vmem:[#allocation2 + $0x30] sm:$0xff] %v247
    %260 = vst [vmem:[#allocation2 + $0x38] sm:$0xff] %v250
    %v261 = vld [vmem:[%s1] sm:$0xff]
    %s262 = scalar_lea.vmem %s1, 8
    %v263 = vld [vmem:[%s262] sm:$0xff]
    %v264 = vlaneseq
    %v265 = vand.u32 %v264, 127
    %vm266 = vcmp.lt.s32.totalorder %v265, 12
    %v267 = vld [vmem:[#allocation2] sm:$0xff]
    %v268 = vpack.c.bf16 %v261, %v261
    %v269 = vld [vmem:[%s4] sm:$0xf]
    %v270 = vld [vmem:[%s4 + $0x4] sm:$0xf]
    %v271 = vld [vmem:[%s4 + $0x8] sm:$0xf]
    %v272 = vld [vmem:[%s4 + $0xc] sm:$0xf]
    %v273 = vld [vmem:[%s4 + $0x10] sm:$0xf]
    %v274 = vld [vmem:[%s4 + $0x14] sm:$0xf]
    %v275 = vld [vmem:[%s4 + $0x18] sm:$0xf]
    %v276 = vld [vmem:[%s4 + $0x1c] sm:$0xf]
    %v277 = vld [vmem:[%s4 + $0x20] sm:$0xf]
    %v278 = vld [vmem:[%s4 + $0x24] sm:$0xf]
    %v279 = vld [vmem:[%s4 + $0x28] sm:$0xf]
    %v280 = vld [vmem:[%s4 + $0x2c] sm:$0xf]
    %v281 = vld [vmem:[%s4 + $0x30] sm:$0xf]
    %v282 = vld [vmem:[%s4 + $0x34] sm:$0xf]
    %v283 = vld [vmem:[%s4 + $0x38] sm:$0xf]
    %v284 = vld [vmem:[%s4 + $0x3c] sm:$0xf]
    %v285 = vld [vmem:[%s5] sm:$0x1]
    %v287 = vlaneseq
    %v288 = vshrl.u32 %v287, 7
    %v289 = vsub.s32 0, %v288
    %v290 = vrot.slane %v285, %v289
    %v308 = vunpack.c.l.b16 %v269
    %v309 = vunpack.c.l.b16 %v270
    %v310 = vunpack.c.l.b16 %v271
    %v311 = vunpack.c.l.b16 %v272
    %v312 = vunpack.c.l.b16 %v273
    %v313 = vunpack.c.l.b16 %v274
    %v314 = vunpack.c.l.b16 %v275
    %v315 = vunpack.c.l.b16 %v276
    %v316 = vunpack.c.l.b16 %v277
    %v317 = vunpack.c.l.b16 %v278
    %v318 = vunpack.c.l.b16 %v279
    %v319 = vunpack.c.l.b16 %v280
    %v320 = vunpack.c.l.b16 %v281
    %v321 = vunpack.c.l.b16 %v282
    %v322 = vunpack.c.l.b16 %v283
    %v323 = vunpack.c.l.b16 %v284
    %v324 = vpack.c.b16 %v309, %v308
    %v325 = vpack.c.b16 %v311, %v310
    %v326 = vpack.c.b16 %v313, %v312
    %v327 = vpack.c.b16 %v315, %v314
    %v328 = vpack.c.b16 %v317, %v316
    %v329 = vpack.c.b16 %v319, %v318
    %v330 = vpack.c.b16 %v321, %v320
    %v331 = vpack.c.b16 %v323, %v322
    %340 = vmatprep.subr.bf16.mxu0 0
    %341 = vmatpush1.bf16.msra.mxu0 %v324
    %342 = vmatprep.subr.bf16.mxu0 0
    %343 = vmatpush1.bf16.msra.mxu0 %v325
    %344 = vmatprep.subr.bf16.mxu0 0
    %345 = vmatpush1.bf16.msra.mxu0 %v326
    %346 = vmatprep.subr.bf16.mxu0 0
    %347 = vmatpush1.bf16.msra.mxu0 %v327
    %348 = vmatprep.subr.bf16.mxu0 0
    %349 = vmatpush1.bf16.msra.mxu0 %v328
    %350 = vmatprep.subr.bf16.mxu0 0
    %351 = vmatpush1.bf16.msra.mxu0 %v329
    %352 = vmatprep.subr.bf16.mxu0 0
    %353 = vmatpush1.bf16.msra.mxu0 %v330
    %354 = vmatprep.subr.bf16.mxu0 0
    %355 = vmatpush1.bf16.msra.mxu0 %v331
    %356 = vmatprep.subr.bf16.mxu0 0
    %357 = vmatpush1.bf16.msra.mxu0 0
    %358 = vmatprep.subr.bf16.mxu0 0
    %359 = vmatpush1.bf16.msra.mxu0 0
    %360 = vmatprep.subr.bf16.mxu0 0
    %361 = vmatpush1.bf16.msra.mxu0 0
    %362 = vmatprep.subr.bf16.mxu0 0
    %363 = vmatpush1.bf16.msra.mxu0 0
    %364 = vmatprep.subr.bf16.mxu0 0
    %365 = vmatpush1.bf16.msra.mxu0 0
    %366 = vmatprep.subr.bf16.mxu0 0
    %367 = vmatpush1.bf16.msra.mxu0 0
    %368 = vmatprep.subr.bf16.mxu0 0
    %369 = vmatpush1.bf16.msra.mxu0 0
    %370 = vmatprep.subr.bf16.mxu0 0
    %371 = vmatpush1.bf16.msra.mxu0 0
    %372 = vmatprep.mubr.bf16.mxu0 0
    %373 = vmatmul.mubr.bf16.gmra.mrb[0].mxu0 %v268
    %v374 = vpop.f32.mrb[0].mxu0
    %v375 = vadd.f32 %v290, %v374
    %v376 = vpop.f32.mrb[0].mxu0
    %v377 = vpop.f32.mrb[0].mxu0
    %v378 = vpop.f32.mrb[0].mxu0
    %379 = vdwg.mxu0
    %v380 = vadd.f32 %v267, %v375
    %v381 = vxor.u32 %v380, 2147483648
    %v382 = vmul.f32 %v381, 1.442695
    %v383 = vpow.pop %v382
    %v384 = vadd.f32 %v383, 1.0
    %v385 = vrcp.pop %v384
    %v386 = vmul.f32 1.0, %v385
    %387 = vrot.lane.b32.xlu0 %v386, 16
    %v388 = vpop.permute.xlu0 %387
    %v389 = vmul.f32 %v388, %v380
    %390 = vrot.lane.b32.xlu0 %v389, 64
    %v391 = vpop.permute.xlu0 %390
    %v392 = vadd.f32 %v380, %v391
    %v393 = vtanh.pop %v392
    %v394 = vsub.f32 1.0, %v388
    %v395 = vmul.f32 %v394, %v393
    %v396 = vmul.f32 %v388, %v261
    %v397 = vadd.f32 %v395, %v396
    %v398 = vsel %vm266, %v397, 0.0
    %399 = vrot.lane.b32.xlu0 %v263, 64
    %v400 = vpop.permute.xlu0 %399
    %v401 = vadd.f32 %v398, %v400
    %v402 = vpack.c.bf16 %v401, %v401
    %v403 = vld [vmem:[#allocation3] sm:$0xf]
    %v404 = vld [vmem:[#allocation3 + $0x4] sm:$0xf]
    %v405 = vld [vmem:[#allocation3 + $0x8] sm:$0xf]
    %v406 = vld [vmem:[#allocation3 + $0xc] sm:$0xf]
    %v407 = vld [vmem:[#allocation3 + $0x10] sm:$0xf]
    %v408 = vld [vmem:[#allocation3 + $0x14] sm:$0xf]
    %v409 = vld [vmem:[#allocation3 + $0x18] sm:$0xf]
    %v410 = vld [vmem:[#allocation3 + $0x1c] sm:$0xf]
    %v411 = vld [vmem:[#allocation3 + $0x20] sm:$0xf]
    %v412 = vld [vmem:[#allocation3 + $0x24] sm:$0xf]
    %v413 = vld [vmem:[#allocation3 + $0x28] sm:$0xf]
    %v414 = vld [vmem:[#allocation3 + $0x2c] sm:$0xf]
    %v415 = vld [vmem:[#allocation3 + $0x30] sm:$0xf]
    %v416 = vld [vmem:[#allocation3 + $0x34] sm:$0xf]
    %v417 = vld [vmem:[#allocation3 + $0x38] sm:$0xf]
    %v418 = vld [vmem:[#allocation3 + $0x3c] sm:$0xf]
    %v419 = vld [vmem:[%s7] sm:$0x1]
    %v421 = vlaneseq
    %v422 = vshrl.u32 %v421, 7
    %v423 = vsub.s32 0, %v422
    %v424 = vrot.slane %v419, %v423
    %v442 = vunpack.c.l.b16 %v403
    %v443 = vunpack.c.l.b16 %v404
    %v444 = vunpack.c.l.b16 %v405
    %v445 = vunpack.c.l.b16 %v406
    %v446 = vunpack.c.l.b16 %v407
    %v447 = vunpack.c.l.b16 %v408
    %v448 = vunpack.c.l.b16 %v409
    %v449 = vunpack.c.l.b16 %v410
    %v450 = vunpack.c.l.b16 %v411
    %v451 = vunpack.c.l.b16 %v412
    %v452 = vunpack.c.l.b16 %v413
    %v453 = vunpack.c.l.b16 %v414
    %v454 = vunpack.c.l.b16 %v415
    %v455 = vunpack.c.l.b16 %v416
    %v456 = vunpack.c.l.b16 %v417
    %v457 = vunpack.c.l.b16 %v418
    %v458 = vpack.c.b16 %v443, %v442
    %v459 = vpack.c.b16 %v445, %v444
    %v460 = vpack.c.b16 %v447, %v446
    %v461 = vpack.c.b16 %v449, %v448
    %v462 = vpack.c.b16 %v451, %v450
    %v463 = vpack.c.b16 %v453, %v452
    %v464 = vpack.c.b16 %v455, %v454
    %v465 = vpack.c.b16 %v457, %v456
    %474 = vmatprep.subr.bf16.mxu0 0
    %475 = vmatpush1.bf16.msra.mxu0 %v458
    %476 = vmatprep.subr.bf16.mxu0 0
    %477 = vmatpush1.bf16.msra.mxu0 %v459
    %478 = vmatprep.subr.bf16.mxu0 0
    %479 = vmatpush1.bf16.msra.mxu0 %v460
    %480 = vmatprep.subr.bf16.mxu0 0
    %481 = vmatpush1.bf16.msra.mxu0 %v461
    %482 = vmatprep.subr.bf16.mxu0 0
    %483 = vmatpush1.bf16.msra.mxu0 %v462
    %484 = vmatprep.subr.bf16.mxu0 0
    %485 = vmatpush1.bf16.msra.mxu0 %v463
    %486 = vmatprep.subr.bf16.mxu0 0
    %487 = vmatpush1.bf16.msra.mxu0 %v464
    %488 = vmatprep.subr.bf16.mxu0 0
    %489 = vmatpush1.bf16.msra.mxu0 %v465
    %490 = vmatprep.subr.bf16.mxu0 0
    %491 = vmatpush1.bf16.msra.mxu0 0
    %492 = vmatprep.subr.bf16.mxu0 0
    %493 = vmatpush1.bf16.msra.mxu0 0
    %494 = vmatprep.subr.bf16.mxu0 0
    %495 = vmatpush1.bf16.msra.mxu0 0
    %496 = vmatprep.subr.bf16.mxu0 0
    %497 = vmatpush1.bf16.msra.mxu0 0
    %498 = vmatprep.subr.bf16.mxu0 0
    %499 = vmatpush1.bf16.msra.mxu0 0
    %500 = vmatprep.subr.bf16.mxu0 0
    %501 = vmatpush1.bf16.msra.mxu0 0
    %502 = vmatprep.subr.bf16.mxu0 0
    %503 = vmatpush1.bf16.msra.mxu0 0
    %504 = vmatprep.subr.bf16.mxu0 0
    %505 = vmatpush1.bf16.msra.mxu0 0
    %506 = vmatprep.mubr.bf16.mxu0 0
    %507 = vmatmul.mubr.bf16.gmra.mrb[0].mxu0 %v402
    %v508 = vpop.f32.mrb[0].mxu0
    %v509 = vadd.f32 %v424, %v508
    %v510 = vpop.f32.mrb[0].mxu0
    %v511 = vpop.f32.mrb[0].mxu0
    %v512 = vpop.f32.mrb[0].mxu0
    %513 = vdwg.mxu0
    %v514 = vxor.u32 %v509, 2147483648
    %v515 = vmul.f32 %v514, 1.442695
    %v516 = vpow.pop %v515
    %v517 = vadd.f32 %v516, 1.0
    %v518 = vrcp.pop %v517
    %v519 = vmul.f32 1.0, %v518
    %520 = vrot.lane.b32.xlu0 %v519, 16
    %v521 = vpop.permute.xlu0 %520
    %v522 = vmul.f32 %v521, %v509
    %523 = vrot.lane.b32.xlu0 %v522, 64
    %v524 = vpop.permute.xlu0 %523
    %v525 = vadd.f32 %v509, %v524
    %v526 = vtanh.pop %v525
    %v527 = vsub.f32 1.0, %v521
    %v528 = vmul.f32 %v527, %v526
    %v529 = vmul.f32 %v521, %v263
    %v530 = vadd.f32 %v528, %v529
    %v531 = vsel %vm266, %v530, 0.0
    %v532 = vld [vmem:[#allocation2 + $0x8] sm:$0xff]
    %v533 = vpack.c.bf16 %v398, %v398
    %534 = vmatprep.subr.bf16.mxu0 0
    %535 = vmatpush1.bf16.msra.mxu0 %v324
    %536 = vmatprep.subr.bf16.mxu0 0
    %537 = vmatpush1.bf16.msra.mxu0 %v325
    %538 = vmatprep.subr.bf16.mxu0 0
    %539 = vmatpush1.bf16.msra.mxu0 %v326
    %540 = vmatprep.subr.bf16.mxu0 0
    %541 = vmatpush1.bf16.msra.mxu0 %v327
    %542 = vmatprep.subr.bf16.mxu0 0
    %543 = vmatpush1.bf16.msra.mxu0 %v328
    %544 = vmatprep.subr.bf16.mxu0 0
    %545 = vmatpush1.bf16.msra.mxu0 %v329
    %546 = vmatprep.subr.bf16.mxu0 0
    %547 = vmatpush1.bf16.msra.mxu0 %v330
    %548 = vmatprep.subr.bf16.mxu0 0
    %549 = vmatpush1.bf16.msra.mxu0 %v331
    %550 = vmatprep.subr.bf16.mxu0 0
    %551 = vmatpush1.bf16.msra.mxu0 0
    %552 = vmatprep.subr.bf16.mxu0 0
    %553 = vmatpush1.bf16.msra.mxu0 0
    %554 = vmatprep.subr.bf16.mxu0 0
    %555 = vmatpush1.bf16.msra.mxu0 0
    %556 = vmatprep.subr.bf16.mxu0 0
    %557 = vmatpush1.bf16.msra.mxu0 0
    %558 = vmatprep.subr.bf16.mxu0 0
    %559 = vmatpush1.bf16.msra.mxu0 0
    %560 = vmatprep.subr.bf16.mxu0 0
    %561 = vmatpush1.bf16.msra.mxu0 0
    %562 = vmatprep.subr.bf16.mxu0 0
    %563 = vmatpush1.bf16.msra.mxu0 0
    %564 = vmatprep.subr.bf16.mxu0 0
    %565 = vmatpush1.bf16.msra.mxu0 0
    %566 = vmatprep.mubr.bf16.mxu0 0
    %567 = vmatmul.mubr.bf16.gmra.mrb[0].mxu0 %v533
    %v568 = vpop.f32.mrb[0].mxu0
    %v569 = vadd.f32 %v290, %v568
    %v570 = vpop.f32.mrb[0].mxu0
    %v571 = vpop.f32.mrb[0].mxu0
    %v572 = vpop.f32.mrb[0].mxu0
    %573 = vdwg.mxu0
    %v574 = vadd.f32 %v532, %v569
    %v575 = vxor.u32 %v574, 2147483648
    %v576 = vmul.f32 %v575, 1.442695
    %v577 = vpow.pop %v576
    %v578 = vadd.f32 %v577, 1.0
    %v579 = vrcp.pop %v578
    %v580 = vmul.f32 1.0, %v579
    %581 = vrot.lane.b32.xlu0 %v580, 16
    %v582 = vpop.permute.xlu0 %581
    %v583 = vmul.f32 %v582, %v574
    %584 = vrot.lane.b32.xlu0 %v583, 64
    %v585 = vpop.permute.xlu0 %584
    %v586 = vadd.f32 %v574, %v585
    %v587 = vtanh.pop %v586
    %v588 = vsub.f32 1.0, %v582
    %v589 = vmul.f32 %v588, %v587
    %v590 = vmul.f32 %v582, %v398
    %v591 = vadd.f32 %v589, %v590
    %v592 = vsel %vm266, %v591, 0.0
    %593 = vrot.lane.b32.xlu0 %v531, 64
    %v594 = vpop.permute.xlu0 %593
    %v595 = vadd.f32 %v592, %v594
    %v596 = vpack.c.bf16 %v595, %v595
    %597 = vmatprep.subr.bf16.mxu0 0
    %598 = vmatpush1.bf16.msra.mxu0 %v458
    %599 = vmatprep.subr.bf16.mxu0 0
    %600 = vmatpush1.bf16.msra.mxu0 %v459
    %601 = vmatprep.subr.bf16.mxu0 0
    %602 = vmatpush1.bf16.msra.mxu0 %v460
    %603 = vmatprep.subr.bf16.mxu0 0
    %604 = vmatpush1.bf16.msra.mxu0 %v461
    %605 = vmatprep.subr.bf16.mxu0 0
    %606 = vmatpush1.bf16.msra.mxu0 %v462
    %607 = vmatprep.subr.bf16.mxu0 0
    %608 = vmatpush1.bf16.msra.mxu0 %v463
    %609 = vmatprep.subr.bf16.mxu0 0
    %610 = vmatpush1.bf16.msra.mxu0 %v464
    %611 = vmatprep.subr.bf16.mxu0 0
    %612 = vmatpush1.bf16.msra.mxu0 %v465
    %613 = vmatprep.subr.bf16.mxu0 0
    %614 = vmatpush1.bf16.msra.mxu0 0
    %615 = vmatprep.subr.bf16.mxu0 0
    %616 = vmatpush1.bf16.msra.mxu0 0
    %617 = vmatprep.subr.bf16.mxu0 0
    %618 = vmatpush1.bf16.msra.mxu0 0
    %619 = vmatprep.subr.bf16.mxu0 0
    %620 = vmatpush1.bf16.msra.mxu0 0
    %621 = vmatprep.subr.bf16.mxu0 0
    %622 = vmatpush1.bf16.msra.mxu0 0
    %623 = vmatprep.subr.bf16.mxu0 0
    %624 = vmatpush1.bf16.msra.mxu0 0
    %625 = vmatprep.subr.bf16.mxu0 0
    %626 = vmatpush1.bf16.msra.mxu0 0
    %627 = vmatprep.subr.bf16.mxu0 0
    %628 = vmatpush1.bf16.msra.mxu0 0
    %629 = vmatprep.mubr.bf16.mxu0 0
    %630 = vmatmul.mubr.bf16.gmra.mrb[0].mxu0 %v596
    %v631 = vpop.f32.mrb[0].mxu0
    %v632 = vadd.f32 %v424, %v631
    %v633 = vpop.f32.mrb[0].mxu0
    %v634 = vpop.f32.mrb[0].mxu0
    %v635 = vpop.f32.mrb[0].mxu0
    %636 = vdwg.mxu0
    %v637 = vxor.u32 %v632, 2147483648
    %v638 = vmul.f32 %v637, 1.442695
    %v639 = vpow.pop %v638
    %v640 = vadd.f32 %v639, 1.0
    %v641 = vrcp.pop %v640
    %v642 = vmul.f32 1.0, %v641
    %643 = vrot.lane.b32.xlu0 %v642, 16
    %v644 = vpop.permute.xlu0 %643
    %v645 = vmul.f32 %v644, %v632
    %646 = vrot.lane.b32.xlu0 %v645, 64
    %v647 = vpop.permute.xlu0 %646
    %v648 = vadd.f32 %v632, %v647
    %v649 = vtanh.pop %v648
    %v650 = vsub.f32 1.0, %v644
    %v651 = vmul.f32 %v650, %v649
    %v652 = vmul.f32 %v644, %v531
    %v653 = vadd.f32 %v651, %v652
    %v654 = vsel %vm266, %v653, 0.0
    %v655 = vld [vmem:[#allocation2 + $0x10] sm:$0xff]
    %v656 = vpack.c.bf16 %v592, %v592
    %657 = vmatprep.subr.bf16.mxu0 0
    %658 = vmatpush1.bf16.msra.mxu0 %v324
    %659 = vmatprep.subr.bf16.mxu0 0
    %660 = vmatpush1.bf16.msra.mxu0 %v325
    %661 = vmatprep.subr.bf16.mxu0 0
    %662 = vmatpush1.bf16.msra.mxu0 %v326
    %663 = vmatprep.subr.bf16.mxu0 0
    %664 = vmatpush1.bf16.msra.mxu0 %v327
    %665 = vmatprep.subr.bf16.mxu0 0
    %666 = vmatpush1.bf16.msra.mxu0 %v328
    %667 = vmatprep.subr.bf16.mxu0 0
    %668 = vmatpush1.bf16.msra.mxu0 %v329
    %669 = vmatprep.subr.bf16.mxu0 0
    %670 = vmatpush1.bf16.msra.mxu0 %v330
    %671 = vmatprep.subr.bf16.mxu0 0
    %672 = vmatpush1.bf16.msra.mxu0 %v331
    %673 = vmatprep.subr.bf16.mxu0 0
    %674 = vmatpush1.bf16.msra.mxu0 0
    %675 = vmatprep.subr.bf16.mxu0 0
    %676 = vmatpush1.bf16.msra.mxu0 0
    %677 = vmatprep.subr.bf16.mxu0 0
    %678 = vmatpush1.bf16.msra.mxu0 0
    %679 = vmatprep.subr.bf16.mxu0 0
    %680 = vmatpush1.bf16.msra.mxu0 0
    %681 = vmatprep.subr.bf16.mxu0 0
    %682 = vmatpush1.bf16.msra.mxu0 0
    %683 = vmatprep.subr.bf16.mxu0 0
    %684 = vmatpush1.bf16.msra.mxu0 0
    %685 = vmatprep.subr.bf16.mxu0 0
    %686 = vmatpush1.bf16.msra.mxu0 0
    %687 = vmatprep.subr.bf16.mxu0 0
    %688 = vmatpush1.bf16.msra.mxu0 0
    %689 = vmatprep.mubr.bf16.mxu0 0
    %690 = vmatmul.mubr.bf16.gmra.mrb[0].mxu0 %v656
    %v691 = vpop.f32.mrb[0].mxu0
    %v692 = vadd.f32 %v290, %v691
    %v693 = vpop.f32.mrb[0].mxu0
    %v694 = vpop.f32.mrb[0].mxu0
    %v695 = vpop.f32.mrb[0].mxu0
    %696 = vdwg.mxu0
    %v697 = vadd.f32 %v655, %v692
    %v698 = vxor.u32 %v697, 2147483648
    %v699 = vmul.f32 %v698, 1.442695
    %v700 = vpow.pop %v699
    %v701 = vadd.f32 %v700, 1.0
    %v702 = vrcp.pop %v701
    %v703 = vmul.f32 1.0, %v702
    %704 = vrot.lane.b32.xlu0 %v703, 16
    %v705 = vpop.permute.xlu0 %704
    %v706 = vmul.f32 %v705, %v697
    %707 = vrot.lane.b32.xlu0 %v706, 64
    %v708 = vpop.permute.xlu0 %707
    %v709 = vadd.f32 %v697, %v708
    %v710 = vtanh.pop %v709
    %v711 = vsub.f32 1.0, %v705
    %v712 = vmul.f32 %v711, %v710
    %v713 = vmul.f32 %v705, %v592
    %v714 = vadd.f32 %v712, %v713
    %v715 = vsel %vm266, %v714, 0.0
    %716 = vrot.lane.b32.xlu0 %v654, 64
    %v717 = vpop.permute.xlu0 %716
    %v718 = vadd.f32 %v715, %v717
    %v719 = vpack.c.bf16 %v718, %v718
    %720 = vmatprep.subr.bf16.mxu0 0
    %721 = vmatpush1.bf16.msra.mxu0 %v458
    %722 = vmatprep.subr.bf16.mxu0 0
    %723 = vmatpush1.bf16.msra.mxu0 %v459
    %724 = vmatprep.subr.bf16.mxu0 0
    %725 = vmatpush1.bf16.msra.mxu0 %v460
    %726 = vmatprep.subr.bf16.mxu0 0
    %727 = vmatpush1.bf16.msra.mxu0 %v461
    %728 = vmatprep.subr.bf16.mxu0 0
    %729 = vmatpush1.bf16.msra.mxu0 %v462
    %730 = vmatprep.subr.bf16.mxu0 0
    %731 = vmatpush1.bf16.msra.mxu0 %v463
    %732 = vmatprep.subr.bf16.mxu0 0
    %733 = vmatpush1.bf16.msra.mxu0 %v464
    %734 = vmatprep.subr.bf16.mxu0 0
    %735 = vmatpush1.bf16.msra.mxu0 %v465
    %736 = vmatprep.subr.bf16.mxu0 0
    %737 = vmatpush1.bf16.msra.mxu0 0
    %738 = vmatprep.subr.bf16.mxu0 0
    %739 = vmatpush1.bf16.msra.mxu0 0
    %740 = vmatprep.subr.bf16.mxu0 0
    %741 = vmatpush1.bf16.msra.mxu0 0
    %742 = vmatprep.subr.bf16.mxu0 0
    %743 = vmatpush1.bf16.msra.mxu0 0
    %744 = vmatprep.subr.bf16.mxu0 0
    %745 = vmatpush1.bf16.msra.mxu0 0
    %746 = vmatprep.subr.bf16.mxu0 0
    %747 = vmatpush1.bf16.msra.mxu0 0
    %748 = vmatprep.subr.bf16.mxu0 0
    %749 = vmatpush1.bf16.msra.mxu0 0
    %750 = vmatprep.subr.bf16.mxu0 0
    %751 = vmatpush1.bf16.msra.mxu0 0
    %752 = vmatprep.mubr.bf16.mxu0 0
    %753 = vmatmul.mubr.bf16.gmra.mrb[0].mxu0 %v719
    %v754 = vpop.f32.mrb[0].mxu0
    %v755 = vadd.f32 %v424, %v754
    %v756 = vpop.f32.mrb[0].mxu0
    %v757 = vpop.f32.mrb[0].mxu0
    %v758 = vpop.f32.mrb[0].mxu0
    %759 = vdwg.mxu0
    %v760 = vxor.u32 %v755, 2147483648
    %v761 = vmul.f32 %v760, 1.442695
    %v762 = vpow.pop %v761
    %v763 = vadd.f32 %v762, 1.0
    %v764 = vrcp.pop %v763
    %v765 = vmul.f32 1.0, %v764
    %766 = vrot.lane.b32.xlu0 %v765, 16
    %v767 = vpop.permute.xlu0 %766
    %v768 = vmul.f32 %v767, %v755
    %769 = vrot.lane.b32.xlu0 %v768, 64
    %v770 = vpop.permute.xlu0 %769
    %v771 = vadd.f32 %v755, %v770
    %v772 = vtanh.pop %v771
    %v773 = vsub.f32 1.0, %v767
    %v774 = vmul.f32 %v773, %v772
    %v775 = vmul.f32 %v767, %v654
    %v776 = vadd.f32 %v774, %v775
    %v777 = vsel %vm266, %v776, 0.0
    %v778 = vld [vmem:[#allocation2 + $0x18] sm:$0xff]
    %v779 = vpack.c.bf16 %v715, %v715
    %780 = vmatprep.subr.bf16.mxu0 0
    %781 = vmatpush1.bf16.msra.mxu0 %v324
    %782 = vmatprep.subr.bf16.mxu0 0
    %783 = vmatpush1.bf16.msra.mxu0 %v325
    %784 = vmatprep.subr.bf16.mxu0 0
    %785 = vmatpush1.bf16.msra.mxu0 %v326
    %786 = vmatprep.subr.bf16.mxu0 0
    %787 = vmatpush1.bf16.msra.mxu0 %v327
    %788 = vmatprep.subr.bf16.mxu0 0
    %789 = vmatpush1.bf16.msra.mxu0 %v328
    %790 = vmatprep.subr.bf16.mxu0 0
    %791 = vmatpush1.bf16.msra.mxu0 %v329
    %792 = vmatprep.subr.bf16.mxu0 0
    %793 = vmatpush1.bf16.msra.mxu0 %v330
    %794 = vmatprep.subr.bf16.mxu0 0
    %795 = vmatpush1.bf16.msra.mxu0 %v331
    %796 = vmatprep.subr.bf16.mxu0 0
    %797 = vmatpush1.bf16.msra.mxu0 0
    %798 = vmatprep.subr.bf16.mxu0 0
    %799 = vmatpush1.bf16.msra.mxu0 0
    %800 = vmatprep.subr.bf16.mxu0 0
    %801 = vmatpush1.bf16.msra.mxu0 0
    %802 = vmatprep.subr.bf16.mxu0 0
    %803 = vmatpush1.bf16.msra.mxu0 0
    %804 = vmatprep.subr.bf16.mxu0 0
    %805 = vmatpush1.bf16.msra.mxu0 0
    %806 = vmatprep.subr.bf16.mxu0 0
    %807 = vmatpush1.bf16.msra.mxu0 0
    %808 = vmatprep.subr.bf16.mxu0 0
    %809 = vmatpush1.bf16.msra.mxu0 0
    %810 = vmatprep.subr.bf16.mxu0 0
    %811 = vmatpush1.bf16.msra.mxu0 0
    %812 = vmatprep.mubr.bf16.mxu0 0
    %813 = vmatmul.mubr.bf16.gmra.mrb[0].mxu0 %v779
    %v814 = vpop.f32.mrb[0].mxu0
    %v815 = vadd.f32 %v290, %v814
    %v816 = vpop.f32.mrb[0].mxu0
    %v817 = vpop.f32.mrb[0].mxu0
    %v818 = vpop.f32.mrb[0].mxu0
    %819 = vdwg.mxu0
    %v820 = vadd.f32 %v778, %v815
    %v821 = vxor.u32 %v820, 2147483648
    %v822 = vmul.f32 %v821, 1.442695
    %v823 = vpow.pop %v822
    %v824 = vadd.f32 %v823, 1.0
    %v825 = vrcp.pop %v824
    %v826 = vmul.f32 1.0, %v825
    %827 = vrot.lane.b32.xlu0 %v826, 16
    %v828 = vpop.permute.xlu0 %827
    %v829 = vmul.f32 %v828, %v820
    %830 = vrot.lane.b32.xlu0 %v829, 64
    %v831 = vpop.permute.xlu0 %830
    %v832 = vadd.f32 %v820, %v831
    %v833 = vtanh.pop %v832
    %v834 = vsub.f32 1.0, %v828
    %v835 = vmul.f32 %v834, %v833
    %v836 = vmul.f32 %v828, %v715
    %v837 = vadd.f32 %v835, %v836
    %v838 = vsel %vm266, %v837, 0.0
    %839 = vrot.lane.b32.xlu0 %v777, 64
    %v840 = vpop.permute.xlu0 %839
    %v841 = vadd.f32 %v838, %v840
    %v842 = vpack.c.bf16 %v841, %v841
    %843 = vmatprep.subr.bf16.mxu0 0
    %844 = vmatpush1.bf16.msra.mxu0 %v458
    %845 = vmatprep.subr.bf16.mxu0 0
    %846 = vmatpush1.bf16.msra.mxu0 %v459
    %847 = vmatprep.subr.bf16.mxu0 0
    %848 = vmatpush1.bf16.msra.mxu0 %v460
    %849 = vmatprep.subr.bf16.mxu0 0
    %850 = vmatpush1.bf16.msra.mxu0 %v461
    %851 = vmatprep.subr.bf16.mxu0 0
    %852 = vmatpush1.bf16.msra.mxu0 %v462
    %853 = vmatprep.subr.bf16.mxu0 0
    %854 = vmatpush1.bf16.msra.mxu0 %v463
    %855 = vmatprep.subr.bf16.mxu0 0
    %856 = vmatpush1.bf16.msra.mxu0 %v464
    %857 = vmatprep.subr.bf16.mxu0 0
    %858 = vmatpush1.bf16.msra.mxu0 %v465
    %859 = vmatprep.subr.bf16.mxu0 0
    %860 = vmatpush1.bf16.msra.mxu0 0
    %861 = vmatprep.subr.bf16.mxu0 0
    %862 = vmatpush1.bf16.msra.mxu0 0
    %863 = vmatprep.subr.bf16.mxu0 0
    %864 = vmatpush1.bf16.msra.mxu0 0
    %865 = vmatprep.subr.bf16.mxu0 0
    %866 = vmatpush1.bf16.msra.mxu0 0
    %867 = vmatprep.subr.bf16.mxu0 0
    %868 = vmatpush1.bf16.msra.mxu0 0
    %869 = vmatprep.subr.bf16.mxu0 0
    %870 = vmatpush1.bf16.msra.mxu0 0
    %871 = vmatprep.subr.bf16.mxu0 0
    %872 = vmatpush1.bf16.msra.mxu0 0
    %873 = vmatprep.subr.bf16.mxu0 0
    %874 = vmatpush1.bf16.msra.mxu0 0
    %875 = vmatprep.mubr.bf16.mxu0 0
    %876 = vmatmul.mubr.bf16.gmra.mrb[0].mxu0 %v842
    %v877 = vpop.f32.mrb[0].mxu0
    %v878 = vadd.f32 %v424, %v877
    %v879 = vpop.f32.mrb[0].mxu0
    %v880 = vpop.f32.mrb[0].mxu0
    %v881 = vpop.f32.mrb[0].mxu0
    %882 = vdwg.mxu0
    %v883 = vxor.u32 %v878, 2147483648
    %v884 = vmul.f32 %v883, 1.442695
    %v885 = vpow.pop %v884
    %v886 = vadd.f32 %v885, 1.0
    %v887 = vrcp.pop %v886
    %v888 = vmul.f32 1.0, %v887
    %889 = vrot.lane.b32.xlu0 %v888, 16
    %v890 = vpop.permute.xlu0 %889
    %v891 = vmul.f32 %v890, %v878
    %892 = vrot.lane.b32.xlu0 %v891, 64
    %v893 = vpop.permute.xlu0 %892
    %v894 = vadd.f32 %v878, %v893
    %v895 = vtanh.pop %v894
    %v896 = vsub.f32 1.0, %v890
    %v897 = vmul.f32 %v896, %v895
    %v898 = vmul.f32 %v890, %v777
    %v899 = vadd.f32 %v897, %v898
    %v900 = vsel %vm266, %v899, 0.0
    %v901 = vld [vmem:[#allocation2 + $0x20] sm:$0xff]
    %v902 = vpack.c.bf16 %v838, %v838
    %903 = vmatprep.subr.bf16.mxu0 0
    %904 = vmatpush1.bf16.msra.mxu0 %v324
    %905 = vmatprep.subr.bf16.mxu0 0
    %906 = vmatpush1.bf16.msra.mxu0 %v325
    %907 = vmatprep.subr.bf16.mxu0 0
    %908 = vmatpush1.bf16.msra.mxu0 %v326
    %909 = vmatprep.subr.bf16.mxu0 0
    %910 = vmatpush1.bf16.msra.mxu0 %v327
    %911 = vmatprep.subr.bf16.mxu0 0
    %912 = vmatpush1.bf16.msra.mxu0 %v328
    %913 = vmatprep.subr.bf16.mxu0 0
    %914 = vmatpush1.bf16.msra.mxu0 %v329
    %915 = vmatprep.subr.bf16.mxu0 0
    %916 = vmatpush1.bf16.msra.mxu0 %v330
    %917 = vmatprep.subr.bf16.mxu0 0
    %918 = vmatpush1.bf16.msra.mxu0 %v331
    %919 = vmatprep.subr.bf16.mxu0 0
    %920 = vmatpush1.bf16.msra.mxu0 0
    %921 = vmatprep.subr.bf16.mxu0 0
    %922 = vmatpush1.bf16.msra.mxu0 0
    %923 = vmatprep.subr.bf16.mxu0 0
    %924 = vmatpush1.bf16.msra.mxu0 0
    %925 = vmatprep.subr.bf16.mxu0 0
    %926 = vmatpush1.bf16.msra.mxu0 0
    %927 = vmatprep.subr.bf16.mxu0 0
    %928 = vmatpush1.bf16.msra.mxu0 0
    %929 = vmatprep.subr.bf16.mxu0 0
    %930 = vmatpush1.bf16.msra.mxu0 0
    %931 = vmatprep.subr.bf16.mxu0 0
    %932 = vmatpush1.bf16.msra.mxu0 0
    %933 = vmatprep.subr.bf16.mxu0 0
    %934 = vmatpush1.bf16.msra.mxu0 0
    %935 = vmatprep.mubr.bf16.mxu0 0
    %936 = vmatmul.mubr.bf16.gmra.mrb[0].mxu0 %v902
    %v937 = vpop.f32.mrb[0].mxu0
    %v938 = vadd.f32 %v290, %v937
    %v939 = vpop.f32.mrb[0].mxu0
    %v940 = vpop.f32.mrb[0].mxu0
    %v941 = vpop.f32.mrb[0].mxu0
    %942 = vdwg.mxu0
    %v943 = vadd.f32 %v901, %v938
    %v944 = vxor.u32 %v943, 2147483648
    %v945 = vmul.f32 %v944, 1.442695
    %v946 = vpow.pop %v945
    %v947 = vadd.f32 %v946, 1.0
    %v948 = vrcp.pop %v947
    %v949 = vmul.f32 1.0, %v948
    %950 = vrot.lane.b32.xlu0 %v949, 16
    %v951 = vpop.permute.xlu0 %950
    %v952 = vmul.f32 %v951, %v943
    %953 = vrot.lane.b32.xlu0 %v952, 64
    %v954 = vpop.permute.xlu0 %953
    %v955 = vadd.f32 %v943, %v954
    %v956 = vtanh.pop %v955
    %v957 = vsub.f32 1.0, %v951
    %v958 = vmul.f32 %v957, %v956
    %v959 = vmul.f32 %v951, %v838
    %v960 = vadd.f32 %v958, %v959
    %v961 = vsel %vm266, %v960, 0.0
    %962 = vrot.lane.b32.xlu0 %v900, 64
    %v963 = vpop.permute.xlu0 %962
    %v964 = vadd.f32 %v961, %v963
    %v965 = vpack.c.bf16 %v964, %v964
    %966 = vmatprep.subr.bf16.mxu0 0
    %967 = vmatpush1.bf16.msra.mxu0 %v458
    %968 = vmatprep.subr.bf16.mxu0 0
    %969 = vmatpush1.bf16.msra.mxu0 %v459
    %970 = vmatprep.subr.bf16.mxu0 0
    %971 = vmatpush1.bf16.msra.mxu0 %v460
    %972 = vmatprep.subr.bf16.mxu0 0
    %973 = vmatpush1.bf16.msra.mxu0 %v461
    %974 = vmatprep.subr.bf16.mxu0 0
    %975 = vmatpush1.bf16.msra.mxu0 %v462
    %976 = vmatprep.subr.bf16.mxu0 0
    %977 = vmatpush1.bf16.msra.mxu0 %v463
    %978 = vmatprep.subr.bf16.mxu0 0
    %979 = vmatpush1.bf16.msra.mxu0 %v464
    %980 = vmatprep.subr.bf16.mxu0 0
    %981 = vmatpush1.bf16.msra.mxu0 %v465
    %982 = vmatprep.subr.bf16.mxu0 0
    %983 = vmatpush1.bf16.msra.mxu0 0
    %984 = vmatprep.subr.bf16.mxu0 0
    %985 = vmatpush1.bf16.msra.mxu0 0
    %986 = vmatprep.subr.bf16.mxu0 0
    %987 = vmatpush1.bf16.msra.mxu0 0
    %988 = vmatprep.subr.bf16.mxu0 0
    %989 = vmatpush1.bf16.msra.mxu0 0
    %990 = vmatprep.subr.bf16.mxu0 0
    %991 = vmatpush1.bf16.msra.mxu0 0
    %992 = vmatprep.subr.bf16.mxu0 0
    %993 = vmatpush1.bf16.msra.mxu0 0
    %994 = vmatprep.subr.bf16.mxu0 0
    %995 = vmatpush1.bf16.msra.mxu0 0
    %996 = vmatprep.subr.bf16.mxu0 0
    %997 = vmatpush1.bf16.msra.mxu0 0
    %998 = vmatprep.mubr.bf16.mxu0 0
    %999 = vmatmul.mubr.bf16.gmra.mrb[0].mxu0 %v965
    %v1000 = vpop.f32.mrb[0].mxu0
    %v1001 = vadd.f32 %v424, %v1000
    %v1002 = vpop.f32.mrb[0].mxu0
    %v1003 = vpop.f32.mrb[0].mxu0
    %v1004 = vpop.f32.mrb[0].mxu0
    %1005 = vdwg.mxu0
    %v1006 = vxor.u32 %v1001, 2147483648
    %v1007 = vmul.f32 %v1006, 1.442695
    %v1008 = vpow.pop %v1007
    %v1009 = vadd.f32 %v1008, 1.0
    %v1010 = vrcp.pop %v1009
    %v1011 = vmul.f32 1.0, %v1010
    %1012 = vrot.lane.b32.xlu0 %v1011, 16
    %v1013 = vpop.permute.xlu0 %1012
    %v1014 = vmul.f32 %v1013, %v1001
    %1015 = vrot.lane.b32.xlu0 %v1014, 64
    %v1016 = vpop.permute.xlu0 %1015
    %v1017 = vadd.f32 %v1001, %v1016
    %v1018 = vtanh.pop %v1017
    %v1019 = vsub.f32 1.0, %v1013
    %v1020 = vmul.f32 %v1019, %v1018
    %v1021 = vmul.f32 %v1013, %v900
    %v1022 = vadd.f32 %v1020, %v1021
    %v1023 = vsel %vm266, %v1022, 0.0
    %v1024 = vld [vmem:[#allocation2 + $0x28] sm:$0xff]
    %v1025 = vpack.c.bf16 %v961, %v961
    %1026 = vmatprep.subr.bf16.mxu0 0
    %1027 = vmatpush1.bf16.msra.mxu0 %v324
    %1028 = vmatprep.subr.bf16.mxu0 0
    %1029 = vmatpush1.bf16.msra.mxu0 %v325
    %1030 = vmatprep.subr.bf16.mxu0 0
    %1031 = vmatpush1.bf16.msra.mxu0 %v326
    %1032 = vmatprep.subr.bf16.mxu0 0
    %1033 = vmatpush1.bf16.msra.mxu0 %v327
    %1034 = vmatprep.subr.bf16.mxu0 0
    %1035 = vmatpush1.bf16.msra.mxu0 %v328
    %1036 = vmatprep.subr.bf16.mxu0 0
    %1037 = vmatpush1.bf16.msra.mxu0 %v329
    %1038 = vmatprep.subr.bf16.mxu0 0
    %1039 = vmatpush1.bf16.msra.mxu0 %v330
    %1040 = vmatprep.subr.bf16.mxu0 0
    %1041 = vmatpush1.bf16.msra.mxu0 %v331
    %1042 = vmatprep.subr.bf16.mxu0 0
    %1043 = vmatpush1.bf16.msra.mxu0 0
    %1044 = vmatprep.subr.bf16.mxu0 0
    %1045 = vmatpush1.bf16.msra.mxu0 0
    %1046 = vmatprep.subr.bf16.mxu0 0
    %1047 = vmatpush1.bf16.msra.mxu0 0
    %1048 = vmatprep.subr.bf16.mxu0 0
    %1049 = vmatpush1.bf16.msra.mxu0 0
    %1050 = vmatprep.subr.bf16.mxu0 0
    %1051 = vmatpush1.bf16.msra.mxu0 0
    %1052 = vmatprep.subr.bf16.mxu0 0
    %1053 = vmatpush1.bf16.msra.mxu0 0
    %1054 = vmatprep.subr.bf16.mxu0 0
    %1055 = vmatpush1.bf16.msra.mxu0 0
    %1056 = vmatprep.subr.bf16.mxu0 0
    %1057 = vmatpush1.bf16.msra.mxu0 0
    %1058 = vmatprep.mubr.bf16.mxu0 0
    %1059 = vmatmul.mubr.bf16.gmra.mrb[0].mxu0 %v1025
    %v1060 = vpop.f32.mrb[0].mxu0
    %v1061 = vadd.f32 %v290, %v1060
    %v1062 = vpop.f32.mrb[0].mxu0
    %v1063 = vpop.f32.mrb[0].mxu0
    %v1064 = vpop.f32.mrb[0].mxu0
    %1065 = vdwg.mxu0
    %v1066 = vadd.f32 %v1024, %v1061
    %v1067 = vxor.u32 %v1066, 2147483648
    %v1068 = vmul.f32 %v1067, 1.442695
    %v1069 = vpow.pop %v1068
    %v1070 = vadd.f32 %v1069, 1.0
    %v1071 = vrcp.pop %v1070
    %v1072 = vmul.f32 1.0, %v1071
    %1073 = vrot.lane.b32.xlu0 %v1072, 16
    %v1074 = vpop.permute.xlu0 %1073
    %v1075 = vmul.f32 %v1074, %v1066
    %1076 = vrot.lane.b32.xlu0 %v1075, 64
    %v1077 = vpop.permute.xlu0 %1076
    %v1078 = vadd.f32 %v1066, %v1077
    %v1079 = vtanh.pop %v1078
    %v1080 = vsub.f32 1.0, %v1074
    %v1081 = vmul.f32 %v1080, %v1079
    %v1082 = vmul.f32 %v1074, %v961
    %v1083 = vadd.f32 %v1081, %v1082
    %v1084 = vsel %vm266, %v1083, 0.0
    %1085 = vrot.lane.b32.xlu0 %v1023, 64
    %v1086 = vpop.permute.xlu0 %1085
    %v1087 = vadd.f32 %v1084, %v1086
    %v1088 = vpack.c.bf16 %v1087, %v1087
    %1089 = vmatprep.subr.bf16.mxu0 0
    %1090 = vmatpush1.bf16.msra.mxu0 %v458
    %1091 = vmatprep.subr.bf16.mxu0 0
    %1092 = vmatpush1.bf16.msra.mxu0 %v459
    %1093 = vmatprep.subr.bf16.mxu0 0
    %1094 = vmatpush1.bf16.msra.mxu0 %v460
    %1095 = vmatprep.subr.bf16.mxu0 0
    %1096 = vmatpush1.bf16.msra.mxu0 %v461
    %1097 = vmatprep.subr.bf16.mxu0 0
    %1098 = vmatpush1.bf16.msra.mxu0 %v462
    %1099 = vmatprep.subr.bf16.mxu0 0
    %1100 = vmatpush1.bf16.msra.mxu0 %v463
    %1101 = vmatprep.subr.bf16.mxu0 0
    %1102 = vmatpush1.bf16.msra.mxu0 %v464
    %1103 = vmatprep.subr.bf16.mxu0 0
    %1104 = vmatpush1.bf16.msra.mxu0 %v465
    %1105 = vmatprep.subr.bf16.mxu0 0
    %1106 = vmatpush1.bf16.msra.mxu0 0
    %1107 = vmatprep.subr.bf16.mxu0 0
    %1108 = vmatpush1.bf16.msra.mxu0 0
    %1109 = vmatprep.subr.bf16.mxu0 0
    %1110 = vmatpush1.bf16.msra.mxu0 0
    %1111 = vmatprep.subr.bf16.mxu0 0
    %1112 = vmatpush1.bf16.msra.mxu0 0
    %1113 = vmatprep.subr.bf16.mxu0 0
    %1114 = vmatpush1.bf16.msra.mxu0 0
    %1115 = vmatprep.subr.bf16.mxu0 0
    %1116 = vmatpush1.bf16.msra.mxu0 0
    %1117 = vmatprep.subr.bf16.mxu0 0
    %1118 = vmatpush1.bf16.msra.mxu0 0
    %1119 = vmatprep.subr.bf16.mxu0 0
    %1120 = vmatpush1.bf16.msra.mxu0 0
    %1121 = vmatprep.mubr.bf16.mxu0 0
    %1122 = vmatmul.mubr.bf16.gmra.mrb[0].mxu0 %v1088
    %v1123 = vpop.f32.mrb[0].mxu0
    %v1124 = vadd.f32 %v424, %v1123
    %v1125 = vpop.f32.mrb[0].mxu0
    %v1126 = vpop.f32.mrb[0].mxu0
    %v1127 = vpop.f32.mrb[0].mxu0
    %1128 = vdwg.mxu0
    %v1129 = vxor.u32 %v1124, 2147483648
    %v1130 = vmul.f32 %v1129, 1.442695
    %v1131 = vpow.pop %v1130
    %v1132 = vadd.f32 %v1131, 1.0
    %v1133 = vrcp.pop %v1132
    %v1134 = vmul.f32 1.0, %v1133
    %1135 = vrot.lane.b32.xlu0 %v1134, 16
    %v1136 = vpop.permute.xlu0 %1135
    %v1137 = vmul.f32 %v1136, %v1124
    %1138 = vrot.lane.b32.xlu0 %v1137, 64
    %v1139 = vpop.permute.xlu0 %1138
    %v1140 = vadd.f32 %v1124, %v1139
    %v1141 = vtanh.pop %v1140
    %v1142 = vsub.f32 1.0, %v1136
    %v1143 = vmul.f32 %v1142, %v1141
    %v1144 = vmul.f32 %v1136, %v1023
    %v1145 = vadd.f32 %v1143, %v1144
    %v1146 = vsel %vm266, %v1145, 0.0
    %v1147 = vld [vmem:[#allocation2 + $0x30] sm:$0xff]
    %v1148 = vpack.c.bf16 %v1084, %v1084
    %1149 = vmatprep.subr.bf16.mxu0 0
    %1150 = vmatpush1.bf16.msra.mxu0 %v324
    %1151 = vmatprep.subr.bf16.mxu0 0
    %1152 = vmatpush1.bf16.msra.mxu0 %v325
    %1153 = vmatprep.subr.bf16.mxu0 0
    %1154 = vmatpush1.bf16.msra.mxu0 %v326
    %1155 = vmatprep.subr.bf16.mxu0 0
    %1156 = vmatpush1.bf16.msra.mxu0 %v327
    %1157 = vmatprep.subr.bf16.mxu0 0
    %1158 = vmatpush1.bf16.msra.mxu0 %v328
    %1159 = vmatprep.subr.bf16.mxu0 0
    %1160 = vmatpush1.bf16.msra.mxu0 %v329
    %1161 = vmatprep.subr.bf16.mxu0 0
    %1162 = vmatpush1.bf16.msra.mxu0 %v330
    %1163 = vmatprep.subr.bf16.mxu0 0
    %1164 = vmatpush1.bf16.msra.mxu0 %v331
    %1165 = vmatprep.subr.bf16.mxu0 0
    %1166 = vmatpush1.bf16.msra.mxu0 0
    %1167 = vmatprep.subr.bf16.mxu0 0
    %1168 = vmatpush1.bf16.msra.mxu0 0
    %1169 = vmatprep.subr.bf16.mxu0 0
    %1170 = vmatpush1.bf16.msra.mxu0 0
    %1171 = vmatprep.subr.bf16.mxu0 0
    %1172 = vmatpush1.bf16.msra.mxu0 0
    %1173 = vmatprep.subr.bf16.mxu0 0
    %1174 = vmatpush1.bf16.msra.mxu0 0
    %1175 = vmatprep.subr.bf16.mxu0 0
    %1176 = vmatpush1.bf16.msra.mxu0 0
    %1177 = vmatprep.subr.bf16.mxu0 0
    %1178 = vmatpush1.bf16.msra.mxu0 0
    %1179 = vmatprep.subr.bf16.mxu0 0
    %1180 = vmatpush1.bf16.msra.mxu0 0
    %1181 = vmatprep.mubr.bf16.mxu0 0
    %1182 = vmatmul.mubr.bf16.gmra.mrb[0].mxu0 %v1148
    %v1183 = vpop.f32.mrb[0].mxu0
    %v1184 = vadd.f32 %v290, %v1183
    %v1185 = vpop.f32.mrb[0].mxu0
    %v1186 = vpop.f32.mrb[0].mxu0
    %v1187 = vpop.f32.mrb[0].mxu0
    %1188 = vdwg.mxu0
    %v1189 = vadd.f32 %v1147, %v1184
    %v1190 = vxor.u32 %v1189, 2147483648
    %v1191 = vmul.f32 %v1190, 1.442695
    %v1192 = vpow.pop %v1191
    %v1193 = vadd.f32 %v1192, 1.0
    %v1194 = vrcp.pop %v1193
    %v1195 = vmul.f32 1.0, %v1194
    %1196 = vrot.lane.b32.xlu0 %v1195, 16
    %v1197 = vpop.permute.xlu0 %1196
    %v1198 = vmul.f32 %v1197, %v1189
    %1199 = vrot.lane.b32.xlu0 %v1198, 64
    %v1200 = vpop.permute.xlu0 %1199
    %v1201 = vadd.f32 %v1189, %v1200
    %v1202 = vtanh.pop %v1201
    %v1203 = vsub.f32 1.0, %v1197
    %v1204 = vmul.f32 %v1203, %v1202
    %v1205 = vmul.f32 %v1197, %v1084
    %v1206 = vadd.f32 %v1204, %v1205
    %v1207 = vsel %vm266, %v1206, 0.0
    %1208 = vrot.lane.b32.xlu0 %v1146, 64
    %v1209 = vpop.permute.xlu0 %1208
    %v1210 = vadd.f32 %v1207, %v1209
    %v1211 = vpack.c.bf16 %v1210, %v1210
    %1212 = vmatprep.subr.bf16.mxu0 0
    %1213 = vmatpush1.bf16.msra.mxu0 %v458
    %1214 = vmatprep.subr.bf16.mxu0 0
    %1215 = vmatpush1.bf16.msra.mxu0 %v459
    %1216 = vmatprep.subr.bf16.mxu0 0
    %1217 = vmatpush1.bf16.msra.mxu0 %v460
    %1218 = vmatprep.subr.bf16.mxu0 0
    %1219 = vmatpush1.bf16.msra.mxu0 %v461
    %1220 = vmatprep.subr.bf16.mxu0 0
    %1221 = vmatpush1.bf16.msra.mxu0 %v462
    %1222 = vmatprep.subr.bf16.mxu0 0
    %1223 = vmatpush1.bf16.msra.mxu0 %v463
    %1224 = vmatprep.subr.bf16.mxu0 0
    %1225 = vmatpush1.bf16.msra.mxu0 %v464
    %1226 = vmatprep.subr.bf16.mxu0 0
    %1227 = vmatpush1.bf16.msra.mxu0 %v465
    %1228 = vmatprep.subr.bf16.mxu0 0
    %1229 = vmatpush1.bf16.msra.mxu0 0
    %1230 = vmatprep.subr.bf16.mxu0 0
    %1231 = vmatpush1.bf16.msra.mxu0 0
    %1232 = vmatprep.subr.bf16.mxu0 0
    %1233 = vmatpush1.bf16.msra.mxu0 0
    %1234 = vmatprep.subr.bf16.mxu0 0
    %1235 = vmatpush1.bf16.msra.mxu0 0
    %1236 = vmatprep.subr.bf16.mxu0 0
    %1237 = vmatpush1.bf16.msra.mxu0 0
    %1238 = vmatprep.subr.bf16.mxu0 0
    %1239 = vmatpush1.bf16.msra.mxu0 0
    %1240 = vmatprep.subr.bf16.mxu0 0
    %1241 = vmatpush1.bf16.msra.mxu0 0
    %1242 = vmatprep.subr.bf16.mxu0 0
    %1243 = vmatpush1.bf16.msra.mxu0 0
    %1244 = vmatprep.mubr.bf16.mxu0 0
    %1245 = vmatmul.mubr.bf16.gmra.mrb[0].mxu0 %v1211
    %v1246 = vpop.f32.mrb[0].mxu0
    %v1247 = vadd.f32 %v424, %v1246
    %v1248 = vpop.f32.mrb[0].mxu0
    %v1249 = vpop.f32.mrb[0].mxu0
    %v1250 = vpop.f32.mrb[0].mxu0
    %1251 = vdwg.mxu0
    %v1252 = vxor.u32 %v1247, 2147483648
    %v1253 = vmul.f32 %v1252, 1.442695
    %v1254 = vpow.pop %v1253
    %v1255 = vadd.f32 %v1254, 1.0
    %v1256 = vrcp.pop %v1255
    %v1257 = vmul.f32 1.0, %v1256
    %1258 = vrot.lane.b32.xlu0 %v1257, 16
    %v1259 = vpop.permute.xlu0 %1258
    %v1260 = vmul.f32 %v1259, %v1247
    %1261 = vrot.lane.b32.xlu0 %v1260, 64
    %v1262 = vpop.permute.xlu0 %1261
    %v1263 = vadd.f32 %v1247, %v1262
    %v1264 = vtanh.pop %v1263
    %v1265 = vsub.f32 1.0, %v1259
    %v1266 = vmul.f32 %v1265, %v1264
    %v1267 = vmul.f32 %v1259, %v1146
    %v1268 = vadd.f32 %v1266, %v1267
    %v1269 = vsel %vm266, %v1268, 0.0
    %v1270 = vld [vmem:[#allocation2 + $0x38] sm:$0xff]
    %v1271 = vpack.c.bf16 %v1207, %v1207
    %1272 = vmatprep.subr.bf16.mxu0 0
    %1273 = vmatpush1.bf16.msra.mxu0 %v324
    %1274 = vmatprep.subr.bf16.mxu0 0
    %1275 = vmatpush1.bf16.msra.mxu0 %v325
    %1276 = vmatprep.subr.bf16.mxu0 0
    %1277 = vmatpush1.bf16.msra.mxu0 %v326
    %1278 = vmatprep.subr.bf16.mxu0 0
    %1279 = vmatpush1.bf16.msra.mxu0 %v327
    %1280 = vmatprep.subr.bf16.mxu0 0
    %1281 = vmatpush1.bf16.msra.mxu0 %v328
    %1282 = vmatprep.subr.bf16.mxu0 0
    %1283 = vmatpush1.bf16.msra.mxu0 %v329
    %1284 = vmatprep.subr.bf16.mxu0 0
    %1285 = vmatpush1.bf16.msra.mxu0 %v330
    %1286 = vmatprep.subr.bf16.mxu0 0
    %1287 = vmatpush1.bf16.msra.mxu0 %v331
    %1288 = vmatprep.subr.bf16.mxu0 0
    %1289 = vmatpush1.bf16.msra.mxu0 0
    %1290 = vmatprep.subr.bf16.mxu0 0
    %1291 = vmatpush1.bf16.msra.mxu0 0
    %1292 = vmatprep.subr.bf16.mxu0 0
    %1293 = vmatpush1.bf16.msra.mxu0 0
    %1294 = vmatprep.subr.bf16.mxu0 0
    %1295 = vmatpush1.bf16.msra.mxu0 0
    %1296 = vmatprep.subr.bf16.mxu0 0
    %1297 = vmatpush1.bf16.msra.mxu0 0
    %1298 = vmatprep.subr.bf16.mxu0 0
    %1299 = vmatpush1.bf16.msra.mxu0 0
    %1300 = vmatprep.subr.bf16.mxu0 0
    %1301 = vmatpush1.bf16.msra.mxu0 0
    %1302 = vmatprep.subr.bf16.mxu0 0
    %1303 = vmatpush1.bf16.msra.mxu0 0
    %1304 = vmatprep.mubr.bf16.mxu0 0
    %1305 = vmatmul.mubr.bf16.gmra.mrb[0].mxu0 %v1271
    %v1306 = vpop.f32.mrb[0].mxu0
    %v1307 = vadd.f32 %v290, %v1306
    %v1308 = vpop.f32.mrb[0].mxu0
    %v1309 = vpop.f32.mrb[0].mxu0
    %v1310 = vpop.f32.mrb[0].mxu0
    %1311 = vdwg.mxu0
    %v1312 = vadd.f32 %v1270, %v1307
    %v1313 = vxor.u32 %v1312, 2147483648
    %v1314 = vmul.f32 %v1313, 1.442695
    %v1315 = vpow.pop %v1314
    %v1316 = vadd.f32 %v1315, 1.0
    %v1317 = vrcp.pop %v1316
    %v1318 = vmul.f32 1.0, %v1317
    %1319 = vrot.lane.b32.xlu0 %v1318, 16
    %v1320 = vpop.permute.xlu0 %1319
    %v1321 = vmul.f32 %v1320, %v1312
    %1322 = vrot.lane.b32.xlu0 %v1321, 64
    %v1323 = vpop.permute.xlu0 %1322
    %v1324 = vadd.f32 %v1312, %v1323
    %v1325 = vtanh.pop %v1324
    %v1326 = vsub.f32 1.0, %v1320
    %v1327 = vmul.f32 %v1326, %v1325
    %v1328 = vmul.f32 %v1320, %v1207
    %v1329 = vadd.f32 %v1327, %v1328
    %v1330 = vsel %vm266, %v1329, 0.0
    %1331 = vrot.lane.b32.xlu0 %v1269, 64
    %v1332 = vpop.permute.xlu0 %1331
    %v1333 = vadd.f32 %v1330, %v1332
    %v1334 = vpack.c.bf16 %v1333, %v1333
    %1335 = vmatprep.subr.bf16.mxu0 0
    %1336 = vmatpush1.bf16.msra.mxu0 %v458
    %1337 = vmatprep.subr.bf16.mxu0 0
    %1338 = vmatpush1.bf16.msra.mxu0 %v459
    %1339 = vmatprep.subr.bf16.mxu0 0
    %1340 = vmatpush1.bf16.msra.mxu0 %v460
    %1341 = vmatprep.subr.bf16.mxu0 0
    %1342 = vmatpush1.bf16.msra.mxu0 %v461
    %1343 = vmatprep.subr.bf16.mxu0 0
    %1344 = vmatpush1.bf16.msra.mxu0 %v462
    %1345 = vmatprep.subr.bf16.mxu0 0
    %1346 = vmatpush1.bf16.msra.mxu0 %v463
    %1347 = vmatprep.subr.bf16.mxu0 0
    %1348 = vmatpush1.bf16.msra.mxu0 %v464
    %1349 = vmatprep.subr.bf16.mxu0 0
    %1350 = vmatpush1.bf16.msra.mxu0 %v465
    %1351 = vmatprep.subr.bf16.mxu0 0
    %1352 = vmatpush1.bf16.msra.mxu0 0
    %1353 = vmatprep.subr.bf16.mxu0 0
    %1354 = vmatpush1.bf16.msra.mxu0 0
    %1355 = vmatprep.subr.bf16.mxu0 0
    %1356 = vmatpush1.bf16.msra.mxu0 0
    %1357 = vmatprep.subr.bf16.mxu0 0
    %1358 = vmatpush1.bf16.msra.mxu0 0
    %1359 = vmatprep.subr.bf16.mxu0 0
    %1360 = vmatpush1.bf16.msra.mxu0 0
    %1361 = vmatprep.subr.bf16.mxu0 0
    %1362 = vmatpush1.bf16.msra.mxu0 0
    %1363 = vmatprep.subr.bf16.mxu0 0
    %1364 = vmatpush1.bf16.msra.mxu0 0
    %1365 = vmatprep.subr.bf16.mxu0 0
    %1366 = vmatpush1.bf16.msra.mxu0 0
    %1367 = vmatprep.mubr.bf16.mxu0 0
    %1368 = vmatmul.mubr.bf16.gmra.mrb[0].mxu0 %v1334
    %v1369 = vpop.f32.mrb[0].mxu0
    %v1370 = vadd.f32 %v424, %v1369
    %v1371 = vpop.f32.mrb[0].mxu0
    %v1372 = vpop.f32.mrb[0].mxu0
    %v1373 = vpop.f32.mrb[0].mxu0
    %1374 = vdwg.mxu0
    %v1375 = vxor.u32 %v1370, 2147483648
    %v1376 = vmul.f32 %v1375, 1.442695
    %v1377 = vpow.pop %v1376
    %v1378 = vadd.f32 %v1377, 1.0
    %v1379 = vrcp.pop %v1378
    %v1380 = vmul.f32 1.0, %v1379
    %1381 = vrot.lane.b32.xlu0 %v1380, 16
    %v1382 = vpop.permute.xlu0 %1381
    %v1383 = vmul.f32 %v1382, %v1370
    %1384 = vrot.lane.b32.xlu0 %v1383, 64
    %v1385 = vpop.permute.xlu0 %1384
    %v1386 = vadd.f32 %v1370, %v1385
    %v1387 = vtanh.pop %v1386
    %v1388 = vsub.f32 1.0, %v1382
    %v1389 = vmul.f32 %v1388, %v1387
    %v1390 = vmul.f32 %v1382, %v1269
    %v1391 = vadd.f32 %v1389, %v1390
    %v1392 = vsel %vm266, %v1391, 0.0
    %v1393 = vpack.c.bf16 %v1392, %v1392
    %v1394 = vld [vmem:[#allocation5] sm:$0xf]
    %v1395 = vld [vmem:[#allocation5 + $0x4] sm:$0xf]
    %v1396 = vld [vmem:[#allocation5 + $0x8] sm:$0xf]
    %v1397 = vld [vmem:[#allocation5 + $0xc] sm:$0xf]
    %v1398 = vld [vmem:[#allocation5 + $0x10] sm:$0xf]
    %v1399 = vld [vmem:[#allocation5 + $0x14] sm:$0xf]
    %v1400 = vld [vmem:[#allocation5 + $0x18] sm:$0xf]
    %v1401 = vld [vmem:[#allocation5 + $0x1c] sm:$0xf]
    %v1402 = vld [vmem:[#allocation5 + $0x20] sm:$0xf]
    %v1403 = vld [vmem:[#allocation5 + $0x24] sm:$0xf]
    %v1404 = vld [vmem:[#allocation5 + $0x28] sm:$0xf]
    %v1405 = vld [vmem:[#allocation5 + $0x2c] sm:$0xf]
    %v1406 = vld [vmem:[#allocation5 + $0x30] sm:$0xf]
    %v1407 = vld [vmem:[#allocation5 + $0x34] sm:$0xf]
    %v1408 = vld [vmem:[#allocation5 + $0x38] sm:$0xf]
    %v1409 = vld [vmem:[#allocation5 + $0x3c] sm:$0xf]
    %v1410 = vld [vmem:[%s9] sm:$0x1]
    %v1412 = vlaneseq
    %v1413 = vshrl.u32 %v1412, 7
    %v1414 = vsub.s32 0, %v1413
    %v1415 = vrot.slane %v1410, %v1414
    %v1433 = vunpack.c.l.b16 %v1394
    %v1434 = vunpack.c.l.b16 %v1395
    %v1435 = vunpack.c.l.b16 %v1396
    %v1436 = vunpack.c.l.b16 %v1397
    %v1437 = vunpack.c.l.b16 %v1398
    %v1438 = vunpack.c.l.b16 %v1399
    %v1439 = vunpack.c.l.b16 %v1400
    %v1440 = vunpack.c.l.b16 %v1401
    %v1441 = vunpack.c.l.b16 %v1402
    %v1442 = vunpack.c.l.b16 %v1403
    %v1443 = vunpack.c.l.b16 %v1404
    %v1444 = vunpack.c.l.b16 %v1405
    %v1445 = vunpack.c.l.b16 %v1406
    %v1446 = vunpack.c.l.b16 %v1407
    %v1447 = vunpack.c.l.b16 %v1408
    %v1448 = vunpack.c.l.b16 %v1409
    %v1449 = vpack.c.b16 %v1434, %v1433
    %v1450 = vpack.c.b16 %v1436, %v1435
    %v1451 = vpack.c.b16 %v1438, %v1437
    %v1452 = vpack.c.b16 %v1440, %v1439
    %v1453 = vpack.c.b16 %v1442, %v1441
    %v1454 = vpack.c.b16 %v1444, %v1443
    %v1455 = vpack.c.b16 %v1446, %v1445
    %v1456 = vpack.c.b16 %v1448, %v1447
    %1465 = vmatprep.subr.bf16.mxu0 0
    %1466 = vmatpush1.bf16.msra.mxu0 %v1449
    %1467 = vmatprep.subr.bf16.mxu0 0
    %1468 = vmatpush1.bf16.msra.mxu0 %v1450
    %1469 = vmatprep.subr.bf16.mxu0 0
    %1470 = vmatpush1.bf16.msra.mxu0 %v1451
    %1471 = vmatprep.subr.bf16.mxu0 0
    %1472 = vmatpush1.bf16.msra.mxu0 %v1452
    %1473 = vmatprep.subr.bf16.mxu0 0
    %1474 = vmatpush1.bf16.msra.mxu0 %v1453
    %1475 = vmatprep.subr.bf16.mxu0 0
    %1476 = vmatpush1.bf16.msra.mxu0 %v1454
    %1477 = vmatprep.subr.bf16.mxu0 0
    %1478 = vmatpush1.bf16.msra.mxu0 %v1455
    %1479 = vmatprep.subr.bf16.mxu0 0
    %1480 = vmatpush1.bf16.msra.mxu0 %v1456
    %1481 = vmatprep.subr.bf16.mxu0 0
    %1482 = vmatpush1.bf16.msra.mxu0 0
    %1483 = vmatprep.subr.bf16.mxu0 0
    %1484 = vmatpush1.bf16.msra.mxu0 0
    %1485 = vmatprep.subr.bf16.mxu0 0
    %1486 = vmatpush1.bf16.msra.mxu0 0
    %1487 = vmatprep.subr.bf16.mxu0 0
    %1488 = vmatpush1.bf16.msra.mxu0 0
    %1489 = vmatprep.subr.bf16.mxu0 0
    %1490 = vmatpush1.bf16.msra.mxu0 0
    %1491 = vmatprep.subr.bf16.mxu0 0
    %1492 = vmatpush1.bf16.msra.mxu0 0
    %1493 = vmatprep.subr.bf16.mxu0 0
    %1494 = vmatpush1.bf16.msra.mxu0 0
    %1495 = vmatprep.subr.bf16.mxu0 0
    %1496 = vmatpush1.bf16.msra.mxu0 0
    %1497 = vmatprep.mubr.bf16.mxu0 0
    %1498 = vmatmul.mubr.bf16.gmra.mrb[0].mxu0 %v1393
    %v1499 = vpop.f32.mrb[0].mxu0
    %v1500 = vadd.f32 %v1415, %v1499
    %v1501 = vpop.f32.mrb[0].mxu0
    %v1502 = vpop.f32.mrb[0].mxu0
    %v1503 = vpop.f32.mrb[0].mxu0
    %1504 = vdwg.mxu0
    %v1505 = vmax.f32 %v1500, 0.0
    %v1506 = vpack.c.bf16 %v1505, %v1505
    %v1507 = vld [vmem:[#allocation7] sm:$0xf]
    %v1508 = vld [vmem:[#allocation7 + $0x4] sm:$0xf]
    %v1509 = vld [vmem:[#allocation7 + $0x8] sm:$0xf]
    %v1510 = vld [vmem:[#allocation7 + $0xc] sm:$0xf]
    %v1511 = vld [vmem:[#allocation7 + $0x10] sm:$0xf]
    %v1512 = vld [vmem:[#allocation7 + $0x14] sm:$0xf]
    %v1513 = vld [vmem:[#allocation7 + $0x18] sm:$0xf]
    %v1514 = vld [vmem:[#allocation7 + $0x1c] sm:$0xf]
    %v1515 = vld [vmem:[#allocation7 + $0x20] sm:$0xf]
    %v1516 = vld [vmem:[#allocation7 + $0x24] sm:$0xf]
    %v1517 = vld [vmem:[#allocation7 + $0x28] sm:$0xf]
    %v1518 = vld [vmem:[#allocation7 + $0x2c] sm:$0xf]
    %v1519 = vld [vmem:[#allocation7 + $0x30] sm:$0xf]
    %v1520 = vld [vmem:[#allocation7 + $0x34] sm:$0xf]
    %v1521 = vld [vmem:[#allocation7 + $0x38] sm:$0xf]
    %v1522 = vld [vmem:[#allocation7 + $0x3c] sm:$0xf]
    %v1523 = vld [vmem:[%s11] sm:$0x1]
    %v1525 = vlaneseq
    %v1526 = vshrl.u32 %v1525, 7
    %v1527 = vsub.s32 0, %v1526
    %v1528 = vrot.slane %v1523, %v1527
    %v1546 = vunpack.c.l.b16 %v1507
    %v1547 = vunpack.c.l.b16 %v1508
    %v1548 = vunpack.c.l.b16 %v1509
    %v1549 = vunpack.c.l.b16 %v1510
    %v1550 = vunpack.c.l.b16 %v1511
    %v1551 = vunpack.c.l.b16 %v1512
    %v1552 = vunpack.c.l.b16 %v1513
    %v1553 = vunpack.c.l.b16 %v1514
    %v1554 = vunpack.c.l.b16 %v1515
    %v1555 = vunpack.c.l.b16 %v1516
    %v1556 = vunpack.c.l.b16 %v1517
    %v1557 = vunpack.c.l.b16 %v1518
    %v1558 = vunpack.c.l.b16 %v1519
    %v1559 = vunpack.c.l.b16 %v1520
    %v1560 = vunpack.c.l.b16 %v1521
    %v1561 = vunpack.c.l.b16 %v1522
    %v1562 = vpack.c.b16 %v1547, %v1546
    %v1563 = vpack.c.b16 %v1549, %v1548
    %v1564 = vpack.c.b16 %v1551, %v1550
    %v1565 = vpack.c.b16 %v1553, %v1552
    %v1566 = vpack.c.b16 %v1555, %v1554
    %v1567 = vpack.c.b16 %v1557, %v1556
    %v1568 = vpack.c.b16 %v1559, %v1558
    %v1569 = vpack.c.b16 %v1561, %v1560
    %1578 = vmatprep.subr.bf16.mxu0 0
    %1579 = vmatpush1.bf16.msra.mxu0 %v1562
    %1580 = vmatprep.subr.bf16.mxu0 0
    %1581 = vmatpush1.bf16.msra.mxu0 %v1563
    %1582 = vmatprep.subr.bf16.mxu0 0
    %1583 = vmatpush1.bf16.msra.mxu0 %v1564
    %1584 = vmatprep.subr.bf16.mxu0 0
    %1585 = vmatpush1.bf16.msra.mxu0 %v1565
    %1586 = vmatprep.subr.bf16.mxu0 0
    %1587 = vmatpush1.bf16.msra.mxu0 %v1566
    %1588 = vmatprep.subr.bf16.mxu0 0
    %1589 = vmatpush1.bf16.msra.mxu0 %v1567
    %1590 = vmatprep.subr.bf16.mxu0 0
    %1591 = vmatpush1.bf16.msra.mxu0 %v1568
    %1592 = vmatprep.subr.bf16.mxu0 0
    %1593 = vmatpush1.bf16.msra.mxu0 %v1569
    %1594 = vmatprep.subr.bf16.mxu0 0
    %1595 = vmatpush1.bf16.msra.mxu0 0
    %1596 = vmatprep.subr.bf16.mxu0 0
    %1597 = vmatpush1.bf16.msra.mxu0 0
    %1598 = vmatprep.subr.bf16.mxu0 0
    %1599 = vmatpush1.bf16.msra.mxu0 0
    %1600 = vmatprep.subr.bf16.mxu0 0
    %1601 = vmatpush1.bf16.msra.mxu0 0
    %1602 = vmatprep.subr.bf16.mxu0 0
    %1603 = vmatpush1.bf16.msra.mxu0 0
    %1604 = vmatprep.subr.bf16.mxu0 0
    %1605 = vmatpush1.bf16.msra.mxu0 0
    %1606 = vmatprep.subr.bf16.mxu0 0
    %1607 = vmatpush1.bf16.msra.mxu0 0
    %1608 = vmatprep.subr.bf16.mxu0 0
    %1609 = vmatpush1.bf16.msra.mxu0 0
    %1610 = vmatprep.mubr.bf16.mxu0 0
    %1611 = vmatmul.mubr.bf16.gmra.mrb[0].mxu0 %v1506
    %v1612 = vpop.f32.mrb[0].mxu0
    %v1613 = vadd.f32 %v1528, %v1612
    %v1614 = vpop.f32.mrb[0].mxu0
    %v1615 = vpop.f32.mrb[0].mxu0
    %v1616 = vpop.f32.mrb[0].mxu0
    %1617 = vdwg.mxu0
    %v1618 = vmax.f32 %v1613, 0.0
    %v1619 = vpack.c.bf16 %v1618, %v1618
    %v1620 = vld [vmem:[#allocation8] sm:$0xf]
    %v1621 = vld [vmem:[#allocation8 + $0x4] sm:$0xf]
    %v1622 = vld [vmem:[#allocation8 + $0x8] sm:$0xf]
    %v1623 = vld [vmem:[#allocation8 + $0xc] sm:$0xf]
    %v1624 = vld [vmem:[#allocation8 + $0x10] sm:$0xf]
    %v1625 = vld [vmem:[#allocation8 + $0x14] sm:$0xf]
    %v1626 = vld [vmem:[#allocation8 + $0x18] sm:$0xf]
    %v1627 = vld [vmem:[#allocation8 + $0x1c] sm:$0xf]
    %v1628 = vld [vmem:[#allocation8 + $0x20] sm:$0xf]
    %v1629 = vld [vmem:[#allocation8 + $0x24] sm:$0xf]
    %v1630 = vld [vmem:[#allocation8 + $0x28] sm:$0xf]
    %v1631 = vld [vmem:[#allocation8 + $0x2c] sm:$0xf]
    %v1632 = vld [vmem:[#allocation8 + $0x30] sm:$0xf]
    %v1633 = vld [vmem:[#allocation8 + $0x34] sm:$0xf]
    %v1634 = vld [vmem:[#allocation8 + $0x38] sm:$0xf]
    %v1635 = vld [vmem:[#allocation8 + $0x3c] sm:$0xf]
    %v1636 = vld [vmem:[%s13] sm:$0x1]
    %v1638 = vlaneseq
    %v1639 = vshrl.u32 %v1638, 7
    %v1640 = vsub.s32 0, %v1639
    %v1641 = vrot.slane %v1636, %v1640
    %v1659 = vunpack.c.l.b16 %v1620
    %v1660 = vunpack.c.l.b16 %v1621
    %v1661 = vunpack.c.l.b16 %v1622
    %v1662 = vunpack.c.l.b16 %v1623
    %v1663 = vunpack.c.l.b16 %v1624
    %v1664 = vunpack.c.l.b16 %v1625
    %v1665 = vunpack.c.l.b16 %v1626
    %v1666 = vunpack.c.l.b16 %v1627
    %v1667 = vunpack.c.l.b16 %v1628
    %v1668 = vunpack.c.l.b16 %v1629
    %v1669 = vunpack.c.l.b16 %v1630
    %v1670 = vunpack.c.l.b16 %v1631
    %v1671 = vunpack.c.l.b16 %v1632
    %v1672 = vunpack.c.l.b16 %v1633
    %v1673 = vunpack.c.l.b16 %v1634
    %v1674 = vunpack.c.l.b16 %v1635
    %v1675 = vpack.c.b16 %v1660, %v1659
    %v1676 = vpack.c.b16 %v1662, %v1661
    %v1677 = vpack.c.b16 %v1664, %v1663
    %v1678 = vpack.c.b16 %v1666, %v1665
    %v1679 = vpack.c.b16 %v1668, %v1667
    %v1680 = vpack.c.b16 %v1670, %v1669
    %v1681 = vpack.c.b16 %v1672, %v1671
    %v1682 = vpack.c.b16 %v1674, %v1673
    %1691 = vmatprep.subr.bf16.mxu0 0
    %1692 = vmatpush1.bf16.msra.mxu0 %v1675
    %1693 = vmatprep.subr.bf16.mxu0 0
    %1694 = vmatpush1.bf16.msra.mxu0 %v1676
    %1695 = vmatprep.subr.bf16.mxu0 0
    %1696 = vmatpush1.bf16.msra.mxu0 %v1677
    %1697 = vmatprep.subr.bf16.mxu0 0
    %1698 = vmatpush1.bf16.msra.mxu0 %v1678
    %1699 = vmatprep.subr.bf16.mxu0 0
    %1700 = vmatpush1.bf16.msra.mxu0 %v1679
    %1701 = vmatprep.subr.bf16.mxu0 0
    %1702 = vmatpush1.bf16.msra.mxu0 %v1680
    %1703 = vmatprep.subr.bf16.mxu0 0
    %1704 = vmatpush1.bf16.msra.mxu0 %v1681
    %1705 = vmatprep.subr.bf16.mxu0 0
    %1706 = vmatpush1.bf16.msra.mxu0 %v1682
    %1707 = vmatprep.subr.bf16.mxu0 0
    %1708 = vmatpush1.bf16.msra.mxu0 0
    %1709 = vmatprep.subr.bf16.mxu0 0
    %1710 = vmatpush1.bf16.msra.mxu0 0
    %1711 = vmatprep.subr.bf16.mxu0 0
    %1712 = vmatpush1.bf16.msra.mxu0 0
    %1713 = vmatprep.subr.bf16.mxu0 0
    %1714 = vmatpush1.bf16.msra.mxu0 0
    %1715 = vmatprep.subr.bf16.mxu0 0
    %1716 = vmatpush1.bf16.msra.mxu0 0
    %1717 = vmatprep.subr.bf16.mxu0 0
    %1718 = vmatpush1.bf16.msra.mxu0 0
    %1719 = vmatprep.subr.bf16.mxu0 0
    %1720 = vmatpush1.bf16.msra.mxu0 0
    %1721 = vmatprep.subr.bf16.mxu0 0
    %1722 = vmatpush1.bf16.msra.mxu0 0
    %1723 = vmatprep.mubr.bf16.mxu0 0
    %1724 = vmatmul.mubr.bf16.gmra.mrb[0].mxu0 %v1619
    %v1725 = vpop.f32.mrb[0].mxu0
    %v1726 = vadd.f32 %v1641, %v1725
    %v1727 = vpop.f32.mrb[0].mxu0
    %v1728 = vpop.f32.mrb[0].mxu0
    %v1729 = vpop.f32.mrb[0].mxu0
    %1730 = vdwg.mxu0
    %1731 = vst [vmem:[%s14] sm:$0xff] %v1726
    %1732 = vst [vmem:[%s15] sm:$0xff] %v1330
    %s1733 = scalar_lea.vmem %s15, 8
    %1734 = vst [vmem:[%s1733] sm:$0xff] %v1392
    // Predicated region
    $region74: #{recn_forward.1} parent=1 // pred_check
      _
    $region75: #{recn_forward.1} parent=1 // pred_check_branch
      %1736 = sbr.rel (0) target = $region77
    $region76: #{recn_forward.1} parent=1 // pred_region
      _
    $region77: #{recn_forward.1} parent=1 // pred_fallthru
      _
    // Predicated region
    $region78: #{recn_forward.1} parent=1 // pred_check
      _
    $region79: #{recn_forward.1} parent=1 // pred_check_branch
      %1738 = sbr.rel (0) target = $region81
    $region80: #{recn_forward.1} parent=1 // pred_region
      _
    $region81: #{recn_forward.1} parent=1 // pred_fallthru
      _
    // Predicated region
    $region82: #{recn_forward.1} parent=1 // pred_check
      _
    $region83: #{recn_forward.1} parent=1 // pred_check_branch
      %1740 = sbr.rel (0) target = $region85
    $region84: #{recn_forward.1} parent=1 // pred_region
      _
    $region85: #{recn_forward.1} parent=1 // pred_fallthru
      _
    // Predicated region
    $region86: #{recn_forward.1} parent=1 // pred_check
      _
    $region87: #{recn_forward.1} parent=1 // pred_check_branch
      %1742 = sbr.rel (0) target = $region89
    $region88: #{recn_forward.1} parent=1 // pred_region
      _
    $region89: #{recn_forward.1} parent=1 // pred_fallthru
      _
    %1743 = vsyncpa [#allocation4], 1
    %1744 = vsyncpa [#allocation6], 1
    %1745 = vsyncpa [#allocation9], 1

</llo_original>
